<compile_context>
chip_gen: v7x
topology: tpu7x:2x2x1
jax: 0.10.0
libtpu: 0.0.40
codegen_flags: <defaults>
</compile_context>

<pallas_src>
import jax
import jax.numpy as jnp
from jax import lax
from jax.experimental import pallas as pl
from jax.experimental.pallas import tpu as pltpu


def _lstm_block_kernel(gx_ref, whh_ref, wl_ref, bl_ref,
                       hs_ref, cs_ref, out_ref,
                       h_scr, c_scr):
    """Processes one block of T_tile timesteps.

    Refs (per grid step over T-blocks):
      gx_ref : (T_tile, B, 4H)  precomputed x @ W_ih^T + (b_ih + b_hh)
      whh_ref: (H, 4H)          W_hh^T
      wl_ref : (H, P)           W_linear^T
      bl_ref : (1, P)           b_linear
      hs_ref : (T_tile, B, H)   hidden states for this block (output)
      cs_ref : (T_tile, B, H)   cell states for this block (output)
      out_ref: (T_tile, B, P)   log_softmax(linear(h), dim=batch) (output,
                                transposed to (T, P, B) in the wrapper)
      h_scr, c_scr: (B, H)      recurrent carry across T-blocks.
    """
    blk = pl.program_id(0)
    H = h_scr.shape[1]
    T_tile = gx_ref.shape[0]

    @pl.when(blk == 0)
    def _():
        h_scr[...] = jnp.zeros_like(h_scr)
        c_scr[...] = jnp.zeros_like(c_scr)

    # Loop-invariant weights: load once, stay in vregs across the unrolled loop.
    whh = whh_ref[...]          # (H, 4H)
    wl = wl_ref[...]            # (H, P)
    bl = bl_ref[...]            # (1, P)

    def step(t, carry):
        h_prev, c_prev = carry

        # Serial critical path: only the recurrent matmul (x-projection hoisted).
        gates = gx_ref[t] + jnp.dot(h_prev, whh,
                                    preferred_element_type=jnp.float32)  # (B, 4H)

        # PyTorch LSTMCell gate order: [i, f, g, o]
        i_g = jax.nn.sigmoid(gates[:, 0 * H:1 * H])
        f_g = jax.nn.sigmoid(gates[:, 1 * H:2 * H])
        g_g = jnp.tanh(gates[:, 2 * H:3 * H])
        o_g = jax.nn.sigmoid(gates[:, 3 * H:4 * H])

        c_new = f_g * c_prev + i_g * g_g
        h_new = o_g * jnp.tanh(c_new)

        hs_ref[t] = h_new
        cs_ref[t] = c_new

        # Projection + log_softmax over dim=0 (the batch dim, as in PyTorch).
        # Off the recurrence critical path; stored un-transposed (B, P).
        lin = jnp.dot(h_new, wl, preferred_element_type=jnp.float32) + bl  # (B, P)
        m = jnp.max(lin, axis=0, keepdims=True)
        lse = m + jnp.log(jnp.sum(jnp.exp(lin - m), axis=0, keepdims=True))
        out_ref[t] = lin - lse

        return h_new, c_new

    h_last, c_last = lax.fori_loop(
        0, T_tile, step, (h_scr[...], c_scr[...]), unroll=True)

    # Carry the recurrent state to the next T-block (single store per block).
    h_scr[...] = h_last
    c_scr[...] = c_last


def custom_lstm_forward(batch, w_ih, w_hh, b_ih, b_hh, w_l, b_l, *, t_tile=None):
    """Pallas implementation of CustomLSTM.forward.

    batch: (B, T, F) float32
    w_ih : (4H, F), w_hh: (4H, H), b_ih/b_hh: (4H,)   -- LSTMCell params
    w_l  : (P, H),  b_l : (P,)                        -- Linear params

    Returns ((hidden_states (T, B, H), cell_states (T, B, H)),
             outputs (T, P, B))  -- identical layout/semantics to PyTorch.
    """
    B, T, F = batch.shape
    H = w_hh.shape[1]
    P = w_l.shape[0]

    if t_tile is None:
        t_tile = min(T, 16)
    num_blocks = -(-T // t_tile)
    T_pad = num_blocks * t_tile

    # Hoisted input projection: one big (T*B, F) x (F, 4H) GEMM, biases folded.
    # Laid out (T, B, 4H) so the kernel slices a contiguous (B, 4H) per step.
    gates_x = (jnp.einsum('btf,gf->tbg', batch, w_ih,
                          preferred_element_type=jnp.float32)
               + (b_ih + b_hh)[None, None, :])
    if T_pad != T:
        # Padded (trailing) timesteps compute throwaway state after all real
        # steps; their outputs are sliced off below.
        gates_x = jnp.pad(gates_x, ((0, T_pad - T), (0, 0), (0, 0)))

    whh_t = w_hh.T              # (H, 4H)
    wl_t = w_l.T                # (H, P)
    bl = b_l[None, :]           # (1, P)

    grid_spec = pltpu.PrefetchScalarGridSpec(
        num_scalar_prefetch=0,
        grid=(num_blocks,),
        in_specs=[
            pl.BlockSpec((t_tile, B, 4 * H), lambda i: (i, 0, 0)),
            pl.BlockSpec((H, 4 * H), lambda i: (0, 0)),
            pl.BlockSpec((H, P), lambda i: (0, 0)),
            pl.BlockSpec((1, P), lambda i: (0, 0)),
        ],
        out_specs=[
            pl.BlockSpec((t_tile, B, H), lambda i: (i, 0, 0)),
            pl.BlockSpec((t_tile, B, H), lambda i: (i, 0, 0)),
            pl.BlockSpec((t_tile, B, P), lambda i: (i, 0, 0)),
        ],
        scratch_shapes=[
            pltpu.VMEM((B, H), jnp.float32),   # h carry across T-blocks
            pltpu.VMEM((B, H), jnp.float32),   # c carry across T-blocks
        ],
    )

    hs, cs, lin = pl.pallas_call(
        _lstm_block_kernel,
        grid_spec=grid_spec,
        out_shape=(
            jax.ShapeDtypeStruct((T_pad, B, H), jnp.float32),
            jax.ShapeDtypeStruct((T_pad, B, H), jnp.float32),
            jax.ShapeDtypeStruct((T_pad, B, P), jnp.float32),
        ),
        compiler_params=pltpu.CompilerParams(
            dimension_semantics=("arbitrary",),   # sequential recurrence over T-blocks
        ),
    )(gates_x, whh_t, wl_t, bl)

    hs = hs[:T]
    cs = cs[:T]
    outs = jnp.transpose(lin[:T], (0, 2, 1))   # (T, P, B): matches stack of o_n.T
    return (hs, cs), outs


def _reference_forward(batch, w_ih, w_hh, b_ih, b_hh, w_l, b_l):
    """Pure-JAX reference mirroring the PyTorch forward (for verification)."""
    B, T, F = batch.shape
    H = w_hh.shape[1]
    h = jnp.zeros((B, H), jnp.float32)
    c = jnp.zeros((B, H), jnp.float32)
    hs_list, cs_list, out_list = [], [], []
    for t in range(T):
        x = batch[:, t, :]
        gates = x @ w_ih.T + h @ w_hh.T + b_ih + b_hh
        i_g = jax.nn.sigmoid(gates[:, 0 * H:1 * H])
        f_g = jax.nn.sigmoid(gates[:, 1 * H:2 * H])
        g_g = jnp.tanh(gates[:, 2 * H:3 * H])
        o_g = jax.nn.sigmoid(gates[:, 3 * H:4 * H])
        c = f_g * c + i_g * g_g
        h = o_g * jnp.tanh(c)
        lin = h @ w_l.T + b_l
        o_n = jax.nn.log_softmax(lin, axis=0)
        hs_list.append(h)
        cs_list.append(c)
        out_list.append(o_n.T)
    return (jnp.stack(hs_list), jnp.stack(cs_list)), jnp.stack(out_list)


if __name__ == "__main__":
    # Small shapes consistent with the module.
    B, T, F = 2, 8, 16      # batch, sequence_len, input_size (feature_size)
    H, P = 32, 8            # hidden_size, proj_size

    key = jax.random.PRNGKey(0)
    k_x, k_wih, k_whh, k_bih, k_bhh, k_wl, k_bl = jax.random.split(key, 7)

    # Deterministic parameter init (PyTorch-style uniform(-1/sqrt(H), 1/sqrt(H))).
    bound = 1.0 / jnp.sqrt(jnp.float32(H))
    w_ih = jax.random.uniform(k_wih, (4 * H, F), jnp.float32, -bound, bound)
    w_hh = jax.random.uniform(k_whh, (4 * H, H), jnp.float32, -bound, bound)
    b_ih = jax.random.uniform(k_bih, (4 * H,), jnp.float32, -bound, bound)
    b_hh = jax.random.uniform(k_bhh, (4 * H,), jnp.float32, -bound, bound)
    w_l = jax.random.uniform(k_wl, (P, H), jnp.float32, -bound, bound)
    b_l = jax.random.uniform(k_bl, (P,), jnp.float32, -bound, bound)

    batch = jax.random.normal(k_x, (B, T, F), jnp.float32)

    forward = jax.jit(custom_lstm_forward)
    (hs, cs), outs = jax.block_until_ready(
        forward(batch, w_ih, w_hh, b_ih, b_hh, w_l, b_l))

    (hs_ref, cs_ref), outs_ref = _reference_forward(
        batch, w_ih, w_hh, b_ih, b_hh, w_l, b_l)

    assert hs.shape == (T, B, H) and cs.shape == (T, B, H) and outs.shape == (T, P, B)
    assert jnp.allclose(hs, hs_ref, atol=1e-5, rtol=1e-5)
    assert jnp.allclose(cs, cs_ref, atol=1e-5, rtol=1e-5)
    assert jnp.allclose(outs, outs_ref, atol=1e-5, rtol=1e-5)

    print("KERNEL_OK")
</pallas_src>

<mosaic_0001>
module attributes {stable_mosaic.version = 11 : i64} {
  func.func @_lstm_block_kernel(%arg0: i32, %arg1: memref<8x2x128xf32, #tpu.memory_space<vmem>>, %arg2: memref<32x128xf32, #tpu.memory_space<vmem>>, %arg3: memref<32x8xf32, #tpu.memory_space<vmem>>, %arg4: memref<1x8xf32, #tpu.memory_space<vmem>>, %arg5: memref<8x2x32xf32, #tpu.memory_space<vmem>>, %arg6: memref<8x2x32xf32, #tpu.memory_space<vmem>>, %arg7: memref<8x2x8xf32, #tpu.memory_space<vmem>>, %arg8: memref<2x32xf32, #tpu.memory_space<vmem>>, %arg9: memref<2x32xf32, #tpu.memory_space<vmem>>) attributes {dimension_semantics = [#tpu.dimension_semantics<arbitrary>], iteration_bounds = array<i64: 1>, scalar_prefetch = 0 : i64, scratch_operands = 2 : i64, tpu.core_type = #tpu.core_type<tc>, window_params = [{transform_indices = @transform_0, window_bounds = array<i64: 8, 2, 128>}, {pipeline_mode = #tpu.pipeline_mode<synchronous>, transform_indices = @transform_1, window_bounds = array<i64: 32, 128>}, {pipeline_mode = #tpu.pipeline_mode<synchronous>, transform_indices = @transform_2, window_bounds = array<i64: 32, 8>}, {pipeline_mode = #tpu.pipeline_mode<synchronous>, transform_indices = @transform_3, window_bounds = array<i64: 1, 8>}, {transform_indices = @transform_4, window_bounds = array<i64: 8, 2, 32>}, {transform_indices = @transform_5, window_bounds = array<i64: 8, 2, 32>}, {transform_indices = @transform_6, window_bounds = array<i64: 8, 2, 8>}]} {
    %c0_i32 = arith.constant 0 : i32
    %0 = arith.cmpi eq, %arg0, %c0_i32 : i32
    %1 = arith.extui %0 : i1 to i32
    %c0_i32_0 = arith.constant 0 : i32
    %2 = arith.cmpi ne, %1, %c0_i32_0 : i32
    scf.if %2 {
      %cst_134 = arith.constant 0.000000e+00 : f32
      %458 = vector.broadcast %cst_134 : f32 to vector<2x32xf32>
      %c0_135 = arith.constant 0 : index
      %c0_136 = arith.constant 0 : index
      %459 = vector.load %arg8[%c0_135, %c0_136] : memref<2x32xf32, #tpu.memory_space<vmem>>, vector<2x32xf32>
      tpu.vector_store %arg8[%c0_135, %c0_136], %458 {strides = array<i32>} : memref<2x32xf32, #tpu.memory_space<vmem>>, vector<2x32xf32>,
      %cst_137 = arith.constant 0.000000e+00 : f32
      %460 = vector.broadcast %cst_137 : f32 to vector<2x32xf32>
      %c0_138 = arith.constant 0 : index
      %c0_139 = arith.constant 0 : index
      %461 = vector.load %arg9[%c0_138, %c0_139] : memref<2x32xf32, #tpu.memory_space<vmem>>, vector<2x32xf32>
      tpu.vector_store %arg9[%c0_138, %c0_139], %460 {strides = array<i32>} : memref<2x32xf32, #tpu.memory_space<vmem>>, vector<2x32xf32>,
    } else {
    }
    %c0 = arith.constant 0 : index
    %c0_1 = arith.constant 0 : index
    %3 = vector.load %arg2[%c0, %c0_1] : memref<32x128xf32, #tpu.memory_space<vmem>>, vector<32x128xf32>
    %c0_2 = arith.constant 0 : index
    %c0_3 = arith.constant 0 : index
    %4 = vector.load %arg3[%c0_2, %c0_3] : memref<32x8xf32, #tpu.memory_space<vmem>>, vector<32x8xf32>
    %c0_4 = arith.constant 0 : index
    %c0_5 = arith.constant 0 : index
    %5 = vector.load %arg4[%c0_4, %c0_5] : memref<1x8xf32, #tpu.memory_space<vmem>>, vector<1x8xf32>
    %c0_6 = arith.constant 0 : index
    %c0_7 = arith.constant 0 : index
    %6 = vector.load %arg8[%c0_6, %c0_7] : memref<2x32xf32, #tpu.memory_space<vmem>>, vector<2x32xf32>
    %c0_8 = arith.constant 0 : index
    %c0_9 = arith.constant 0 : index
    %7 = vector.load %arg9[%c0_8, %c0_9] : memref<2x32xf32, #tpu.memory_space<vmem>>, vector<2x32xf32>
    %c0_i32_10 = arith.constant 0 : i32
    %8 = arith.index_cast %c0_i32_10 : i32 to index
    %c0_11 = arith.constant 0 : index
    %c0_12 = arith.constant 0 : index
    %9 = vector.load %arg1[%8, %c0_11, %c0_12] : memref<8x2x128xf32, #tpu.memory_space<vmem>>, vector<1x2x128xf32>
    %10 = vector.shape_cast %9 : vector<1x2x128xf32> to vector<2x128xf32>
    %cst = arith.constant dense<0.000000e+00> : vector<2x128xf32>
    %11 = tpu.matmul %6, %3, %cst {dimension_numbers = #tpu.dot_dimension_numbers<[1], [0], [0], [1], [0, 0, 1, 1], [], []>} : vector<2x32xf32>, vector<32x128xf32>, vector<2x128xf32> -> vector<2x128xf32>
    %12 = arith.addf %10, %11 : vector<2x128xf32>
    %13 = vector.extract_strided_slice %12 {offsets = [0, 0], sizes = [2, 32], strides = [1, 1]} : vector<2x128xf32> to vector<2x32xf32>
    %14 = arith.negf %13 : vector<2x32xf32>
    %15 = math.exp %14 : vector<2x32xf32>
    %cst_13 = arith.constant 1.000000e+00 : f32
    %16 = vector.broadcast %cst_13 : f32 to vector<2x32xf32>
    %17 = arith.addf %16, %15 : vector<2x32xf32>
    %18 = arith.divf %16, %17 : vector<2x32xf32>
    %19 = vector.extract_strided_slice %12 {offsets = [0, 32], sizes = [2, 32], strides = [1, 1]} : vector<2x128xf32> to vector<2x32xf32>
    %20 = arith.negf %19 : vector<2x32xf32>
    %21 = math.exp %20 : vector<2x32xf32>
    %cst_14 = arith.constant 1.000000e+00 : f32
    %22 = vector.broadcast %cst_14 : f32 to vector<2x32xf32>
    %23 = arith.addf %22, %21 : vector<2x32xf32>
    %24 = arith.divf %22, %23 : vector<2x32xf32>
    %25 = vector.extract_strided_slice %12 {offsets = [0, 64], sizes = [2, 32], strides = [1, 1]} : vector<2x128xf32> to vector<2x32xf32>
    %26 = math.tanh %25 : vector<2x32xf32>
    %27 = vector.extract_strided_slice %12 {offsets = [0, 96], sizes = [2, 32], strides = [1, 1]} : vector<2x128xf32> to vector<2x32xf32>
    %28 = arith.negf %27 : vector<2x32xf32>
    %29 = math.exp %28 : vector<2x32xf32>
    %cst_15 = arith.constant 1.000000e+00 : f32
    %30 = vector.broadcast %cst_15 : f32 to vector<2x32xf32>
    %31 = arith.addf %30, %29 : vector<2x32xf32>
    %32 = arith.divf %30, %31 : vector<2x32xf32>
    %33 = arith.mulf %24, %7 : vector<2x32xf32>
    %34 = arith.mulf %18, %26 : vector<2x32xf32>
    %35 = arith.addf %33, %34 : vector<2x32xf32>
    %36 = math.tanh %35 : vector<2x32xf32>
    %37 = arith.mulf %32, %36 : vector<2x32xf32>
    %38 = arith.index_cast %c0_i32_10 : i32 to index
    %c0_16 = arith.constant 0 : index
    %c0_17 = arith.constant 0 : index
    %39 = vector.load %arg5[%38, %c0_16, %c0_17] : memref<8x2x32xf32, #tpu.memory_space<vmem>>, vector<1x2x32xf32>
    %40 = vector.shape_cast %39 : vector<1x2x32xf32> to vector<2x32xf32>
    %41 = vector.shape_cast %37 : vector<2x32xf32> to vector<1x2x32xf32>
    tpu.vector_store %arg5[%38, %c0_16, %c0_17], %41 {strides = array<i32>} : memref<8x2x32xf32, #tpu.memory_space<vmem>>, vector<1x2x32xf32>,
    %42 = arith.index_cast %c0_i32_10 : i32 to index
    %c0_18 = arith.constant 0 : index
    %c0_19 = arith.constant 0 : index
    %43 = vector.load %arg6[%42, %c0_18, %c0_19] : memref<8x2x32xf32, #tpu.memory_space<vmem>>, vector<1x2x32xf32>
    %44 = vector.shape_cast %43 : vector<1x2x32xf32> to vector<2x32xf32>
    %45 = vector.shape_cast %35 : vector<2x32xf32> to vector<1x2x32xf32>
    tpu.vector_store %arg6[%42, %c0_18, %c0_19], %45 {strides = array<i32>} : memref<8x2x32xf32, #tpu.memory_space<vmem>>, vector<1x2x32xf32>,
    %cst_20 = arith.constant dense<0.000000e+00> : vector<2x8xf32>
    %46 = tpu.matmul %37, %4, %cst_20 {dimension_numbers = #tpu.dot_dimension_numbers<[1], [0], [0], [1], [0, 0, 1, 1], [], []>} : vector<2x32xf32>, vector<32x8xf32>, vector<2x8xf32> -> vector<2x8xf32>
    %47 = vector.broadcast %5 : vector<1x8xf32> to vector<2x8xf32>
    %48 = arith.addf %46, %47 : vector<2x8xf32>
    %cst_21 = arith.constant dense<0xFF800000> : vector<8xf32>
    %49 = vector.multi_reduction <maximumf>, %48, %cst_21 [0] : vector<2x8xf32> to vector<8xf32>
    %50 = vector.shape_cast %49 : vector<8xf32> to vector<1x8xf32>
    %51 = vector.broadcast %50 : vector<1x8xf32> to vector<2x8xf32>
    %52 = arith.subf %48, %51 : vector<2x8xf32>
    %53 = math.exp %52 : vector<2x8xf32>
    %cst_22 = arith.constant dense<0.000000e+00> : vector<8xf32>
    %54 = vector.multi_reduction <add>, %53, %cst_22 [0] : vector<2x8xf32> to vector<8xf32>
    %55 = vector.shape_cast %54 : vector<8xf32> to vector<1x8xf32>
    %56 = math.log %55 : vector<1x8xf32>
    %57 = arith.addf %50, %56 : vector<1x8xf32>
    %58 = vector.broadcast %57 : vector<1x8xf32> to vector<2x8xf32>
    %59 = arith.subf %48, %58 : vector<2x8xf32>
    %60 = arith.index_cast %c0_i32_10 : i32 to index
    %c0_23 = arith.constant 0 : index
    %c0_24 = arith.constant 0 : index
    %61 = vector.load %arg7[%60, %c0_23, %c0_24] : memref<8x2x8xf32, #tpu.memory_space<vmem>>, vector<1x2x8xf32>
    %62 = vector.shape_cast %61 : vector<1x2x8xf32> to vector<2x8xf32>
    %63 = vector.shape_cast %59 : vector<2x8xf32> to vector<1x2x8xf32>
    tpu.vector_store %arg7[%60, %c0_23, %c0_24], %63 {strides = array<i32>} : memref<8x2x8xf32, #tpu.memory_space<vmem>>, vector<1x2x8xf32>,
    %c1_i32 = arith.constant 1 : i32
    %64 = arith.index_cast %c1_i32 : i32 to index
    %c0_25 = arith.constant 0 : index
    %c0_26 = arith.constant 0 : index
    %65 = vector.load %arg1[%64, %c0_25, %c0_26] : memref<8x2x128xf32, #tpu.memory_space<vmem>>, vector<1x2x128xf32>
    %66 = vector.shape_cast %65 : vector<1x2x128xf32> to vector<2x128xf32>
    %cst_27 = arith.constant dense<0.000000e+00> : vector<2x128xf32>
    %67 = tpu.matmul %37, %3, %cst_27 {dimension_numbers = #tpu.dot_dimension_numbers<[1], [0], [0], [1], [0, 0, 1, 1], [], []>} : vector<2x32xf32>, vector<32x128xf32>, vector<2x128xf32> -> vector<2x128xf32>
    %68 = arith.addf %66, %67 : vector<2x128xf32>
    %69 = vector.extract_strided_slice %68 {offsets = [0, 0], sizes = [2, 32], strides = [1, 1]} : vector<2x128xf32> to vector<2x32xf32>
    %70 = arith.negf %69 : vector<2x32xf32>
    %71 = math.exp %70 : vector<2x32xf32>
    %cst_28 = arith.constant 1.000000e+00 : f32
    %72 = vector.broadcast %cst_28 : f32 to vector<2x32xf32>
    %73 = arith.addf %72, %71 : vector<2x32xf32>
    %74 = arith.divf %72, %73 : vector<2x32xf32>
    %75 = vector.extract_strided_slice %68 {offsets = [0, 32], sizes = [2, 32], strides = [1, 1]} : vector<2x128xf32> to vector<2x32xf32>
    %76 = arith.negf %75 : vector<2x32xf32>
    %77 = math.exp %76 : vector<2x32xf32>
    %cst_29 = arith.constant 1.000000e+00 : f32
    %78 = vector.broadcast %cst_29 : f32 to vector<2x32xf32>
    %79 = arith.addf %78, %77 : vector<2x32xf32>
    %80 = arith.divf %78, %79 : vector<2x32xf32>
    %81 = vector.extract_strided_slice %68 {offsets = [0, 64], sizes = [2, 32], strides = [1, 1]} : vector<2x128xf32> to vector<2x32xf32>
    %82 = math.tanh %81 : vector<2x32xf32>
    %83 = vector.extract_strided_slice %68 {offsets = [0, 96], sizes = [2, 32], strides = [1, 1]} : vector<2x128xf32> to vector<2x32xf32>
    %84 = arith.negf %83 : vector<2x32xf32>
    %85 = math.exp %84 : vector<2x32xf32>
    %cst_30 = arith.constant 1.000000e+00 : f32
    %86 = vector.broadcast %cst_30 : f32 to vector<2x32xf32>
    %87 = arith.addf %86, %85 : vector<2x32xf32>
    %88 = arith.divf %86, %87 : vector<2x32xf32>
    %89 = arith.mulf %80, %35 : vector<2x32xf32>
    %90 = arith.mulf %74, %82 : vector<2x32xf32>
    %91 = arith.addf %89, %90 : vector<2x32xf32>
    %92 = math.tanh %91 : vector<2x32xf32>
    %93 = arith.mulf %88, %92 : vector<2x32xf32>
    %94 = arith.index_cast %c1_i32 : i32 to index
    %c0_31 = arith.constant 0 : index
    %c0_32 = arith.constant 0 : index
    %95 = vector.load %arg5[%94, %c0_31, %c0_32] : memref<8x2x32xf32, #tpu.memory_space<vmem>>, vector<1x2x32xf32>
    %96 = vector.shape_cast %95 : vector<1x2x32xf32> to vector<2x32xf32>
    %97 = vector.shape_cast %93 : vector<2x32xf32> to vector<1x2x32xf32>
    tpu.vector_store %arg5[%94, %c0_31, %c0_32], %97 {strides = array<i32>} : memref<8x2x32xf32, #tpu.memory_space<vmem>>, vector<1x2x32xf32>,
    %98 = arith.index_cast %c1_i32 : i32 to index
    %c0_33 = arith.constant 0 : index
    %c0_34 = arith.constant 0 : index
    %99 = vector.load %arg6[%98, %c0_33, %c0_34] : memref<8x2x32xf32, #tpu.memory_space<vmem>>, vector<1x2x32xf32>
    %100 = vector.shape_cast %99 : vector<1x2x32xf32> to vector<2x32xf32>
    %101 = vector.shape_cast %91 : vector<2x32xf32> to vector<1x2x32xf32>
    tpu.vector_store %arg6[%98, %c0_33, %c0_34], %101 {strides = array<i32>} : memref<8x2x32xf32, #tpu.memory_space<vmem>>, vector<1x2x32xf32>,
    %cst_35 = arith.constant dense<0.000000e+00> : vector<2x8xf32>
    %102 = tpu.matmul %93, %4, %cst_35 {dimension_numbers = #tpu.dot_dimension_numbers<[1], [0], [0], [1], [0, 0, 1, 1], [], []>} : vector<2x32xf32>, vector<32x8xf32>, vector<2x8xf32> -> vector<2x8xf32>
    %103 = vector.broadcast %5 : vector<1x8xf32> to vector<2x8xf32>
    %104 = arith.addf %102, %103 : vector<2x8xf32>
    %cst_36 = arith.constant dense<0xFF800000> : vector<8xf32>
    %105 = vector.multi_reduction <maximumf>, %104, %cst_36 [0] : vector<2x8xf32> to vector<8xf32>
    %106 = vector.shape_cast %105 : vector<8xf32> to vector<1x8xf32>
    %107 = vector.broadcast %106 : vector<1x8xf32> to vector<2x8xf32>
    %108 = arith.subf %104, %107 : vector<2x8xf32>
    %109 = math.exp %108 : vector<2x8xf32>
    %cst_37 = arith.constant dense<0.000000e+00> : vector<8xf32>
    %110 = vector.multi_reduction <add>, %109, %cst_37 [0] : vector<2x8xf32> to vector<8xf32>
    %111 = vector.shape_cast %110 : vector<8xf32> to vector<1x8xf32>
    %112 = math.log %111 : vector<1x8xf32>
    %113 = arith.addf %106, %112 : vector<1x8xf32>
    %114 = vector.broadcast %113 : vector<1x8xf32> to vector<2x8xf32>
    %115 = arith.subf %104, %114 : vector<2x8xf32>
    %116 = arith.index_cast %c1_i32 : i32 to index
    %c0_38 = arith.constant 0 : index
    %c0_39 = arith.constant 0 : index
    %117 = vector.load %arg7[%116, %c0_38, %c0_39] : memref<8x2x8xf32, #tpu.memory_space<vmem>>, vector<1x2x8xf32>
    %118 = vector.shape_cast %117 : vector<1x2x8xf32> to vector<2x8xf32>
    %119 = vector.shape_cast %115 : vector<2x8xf32> to vector<1x2x8xf32>
    tpu.vector_store %arg7[%116, %c0_38, %c0_39], %119 {strides = array<i32>} : memref<8x2x8xf32, #tpu.memory_space<vmem>>, vector<1x2x8xf32>,
    %c2_i32 = arith.constant 2 : i32
    %120 = arith.index_cast %c2_i32 : i32 to index
    %c0_40 = arith.constant 0 : index
    %c0_41 = arith.constant 0 : index
    %121 = vector.load %arg1[%120, %c0_40, %c0_41] : memref<8x2x128xf32, #tpu.memory_space<vmem>>, vector<1x2x128xf32>
    %122 = vector.shape_cast %121 : vector<1x2x128xf32> to vector<2x128xf32>
    %cst_42 = arith.constant dense<0.000000e+00> : vector<2x128xf32>
    %123 = tpu.matmul %93, %3, %cst_42 {dimension_numbers = #tpu.dot_dimension_numbers<[1], [0], [0], [1], [0, 0, 1, 1], [], []>} : vector<2x32xf32>, vector<32x128xf32>, vector<2x128xf32> -> vector<2x128xf32>
    %124 = arith.addf %122, %123 : vector<2x128xf32>
    %125 = vector.extract_strided_slice %124 {offsets = [0, 0], sizes = [2, 32], strides = [1, 1]} : vector<2x128xf32> to vector<2x32xf32>
    %126 = arith.negf %125 : vector<2x32xf32>
    %127 = math.exp %126 : vector<2x32xf32>
    %cst_43 = arith.constant 1.000000e+00 : f32
    %128 = vector.broadcast %cst_43 : f32 to vector<2x32xf32>
    %129 = arith.addf %128, %127 : vector<2x32xf32>
    %130 = arith.divf %128, %129 : vector<2x32xf32>
    %131 = vector.extract_strided_slice %124 {offsets = [0, 32], sizes = [2, 32], strides = [1, 1]} : vector<2x128xf32> to vector<2x32xf32>
    %132 = arith.negf %131 : vector<2x32xf32>
    %133 = math.exp %132 : vector<2x32xf32>
    %cst_44 = arith.constant 1.000000e+00 : f32
    %134 = vector.broadcast %cst_44 : f32 to vector<2x32xf32>
    %135 = arith.addf %134, %133 : vector<2x32xf32>
    %136 = arith.divf %134, %135 : vector<2x32xf32>
    %137 = vector.extract_strided_slice %124 {offsets = [0, 64], sizes = [2, 32], strides = [1, 1]} : vector<2x128xf32> to vector<2x32xf32>
    %138 = math.tanh %137 : vector<2x32xf32>
    %139 = vector.extract_strided_slice %124 {offsets = [0, 96], sizes = [2, 32], strides = [1, 1]} : vector<2x128xf32> to vector<2x32xf32>
    %140 = arith.negf %139 : vector<2x32xf32>
    %141 = math.exp %140 : vector<2x32xf32>
    %cst_45 = arith.constant 1.000000e+00 : f32
    %142 = vector.broadcast %cst_45 : f32 to vector<2x32xf32>
    %143 = arith.addf %142, %141 : vector<2x32xf32>
    %144 = arith.divf %142, %143 : vector<2x32xf32>
    %145 = arith.mulf %136, %91 : vector<2x32xf32>
    %146 = arith.mulf %130, %138 : vector<2x32xf32>
    %147 = arith.addf %145, %146 : vector<2x32xf32>
    %148 = math.tanh %147 : vector<2x32xf32>
    %149 = arith.mulf %144, %148 : vector<2x32xf32>
    %150 = arith.index_cast %c2_i32 : i32 to index
    %c0_46 = arith.constant 0 : index
    %c0_47 = arith.constant 0 : index
    %151 = vector.load %arg5[%150, %c0_46, %c0_47] : memref<8x2x32xf32, #tpu.memory_space<vmem>>, vector<1x2x32xf32>
    %152 = vector.shape_cast %151 : vector<1x2x32xf32> to vector<2x32xf32>
    %153 = vector.shape_cast %149 : vector<2x32xf32> to vector<1x2x32xf32>
    tpu.vector_store %arg5[%150, %c0_46, %c0_47], %153 {strides = array<i32>} : memref<8x2x32xf32, #tpu.memory_space<vmem>>, vector<1x2x32xf32>,
    %154 = arith.index_cast %c2_i32 : i32 to index
    %c0_48 = arith.constant 0 : index
    %c0_49 = arith.constant 0 : index
    %155 = vector.load %arg6[%154, %c0_48, %c0_49] : memref<8x2x32xf32, #tpu.memory_space<vmem>>, vector<1x2x32xf32>
    %156 = vector.shape_cast %155 : vector<1x2x32xf32> to vector<2x32xf32>
    %157 = vector.shape_cast %147 : vector<2x32xf32> to vector<1x2x32xf32>
    tpu.vector_store %arg6[%154, %c0_48, %c0_49], %157 {strides = array<i32>} : memref<8x2x32xf32, #tpu.memory_space<vmem>>, vector<1x2x32xf32>,
    %cst_50 = arith.constant dense<0.000000e+00> : vector<2x8xf32>
    %158 = tpu.matmul %149, %4, %cst_50 {dimension_numbers = #tpu.dot_dimension_numbers<[1], [0], [0], [1], [0, 0, 1, 1], [], []>} : vector<2x32xf32>, vector<32x8xf32>, vector<2x8xf32> -> vector<2x8xf32>
    %159 = vector.broadcast %5 : vector<1x8xf32> to vector<2x8xf32>
    %160 = arith.addf %158, %159 : vector<2x8xf32>
    %cst_51 = arith.constant dense<0xFF800000> : vector<8xf32>
    %161 = vector.multi_reduction <maximumf>, %160, %cst_51 [0] : vector<2x8xf32> to vector<8xf32>
    %162 = vector.shape_cast %161 : vector<8xf32> to vector<1x8xf32>
    %163 = vector.broadcast %162 : vector<1x8xf32> to vector<2x8xf32>
    %164 = arith.subf %160, %163 : vector<2x8xf32>
    %165 = math.exp %164 : vector<2x8xf32>
    %cst_52 = arith.constant dense<0.000000e+00> : vector<8xf32>
    %166 = vector.multi_reduction <add>, %165, %cst_52 [0] : vector<2x8xf32> to vector<8xf32>
    %167 = vector.shape_cast %166 : vector<8xf32> to vector<1x8xf32>
    %168 = math.log %167 : vector<1x8xf32>
    %169 = arith.addf %162, %168 : vector<1x8xf32>
    %170 = vector.broadcast %169 : vector<1x8xf32> to vector<2x8xf32>
    %171 = arith.subf %160, %170 : vector<2x8xf32>
    %172 = arith.index_cast %c2_i32 : i32 to index
    %c0_53 = arith.constant 0 : index
    %c0_54 = arith.constant 0 : index
    %173 = vector.load %arg7[%172, %c0_53, %c0_54] : memref<8x2x8xf32, #tpu.memory_space<vmem>>, vector<1x2x8xf32>
    %174 = vector.shape_cast %173 : vector<1x2x8xf32> to vector<2x8xf32>
    %175 = vector.shape_cast %171 : vector<2x8xf32> to vector<1x2x8xf32>
    tpu.vector_store %arg7[%172, %c0_53, %c0_54], %175 {strides = array<i32>} : memref<8x2x8xf32, #tpu.memory_space<vmem>>, vector<1x2x8xf32>,
    %c3_i32 = arith.constant 3 : i32
    %176 = arith.index_cast %c3_i32 : i32 to index
    %c0_55 = arith.constant 0 : index
    %c0_56 = arith.constant 0 : index
    %177 = vector.load %arg1[%176, %c0_55, %c0_56] : memref<8x2x128xf32, #tpu.memory_space<vmem>>, vector<1x2x128xf32>
    %178 = vector.shape_cast %177 : vector<1x2x128xf32> to vector<2x128xf32>
    %cst_57 = arith.constant dense<0.000000e+00> : vector<2x128xf32>
    %179 = tpu.matmul %149, %3, %cst_57 {dimension_numbers = #tpu.dot_dimension_numbers<[1], [0], [0], [1], [0, 0, 1, 1], [], []>} : vector<2x32xf32>, vector<32x128xf32>, vector<2x128xf32> -> vector<2x128xf32>
    %180 = arith.addf %178, %179 : vector<2x128xf32>
    %181 = vector.extract_strided_slice %180 {offsets = [0, 0], sizes = [2, 32], strides = [1, 1]} : vector<2x128xf32> to vector<2x32xf32>
    %182 = arith.negf %181 : vector<2x32xf32>
    %183 = math.exp %182 : vector<2x32xf32>
    %cst_58 = arith.constant 1.000000e+00 : f32
    %184 = vector.broadcast %cst_58 : f32 to vector<2x32xf32>
    %185 = arith.addf %184, %183 : vector<2x32xf32>
    %186 = arith.divf %184, %185 : vector<2x32xf32>
    %187 = vector.extract_strided_slice %180 {offsets = [0, 32], sizes = [2, 32], strides = [1, 1]} : vector<2x128xf32> to vector<2x32xf32>
    %188 = arith.negf %187 : vector<2x32xf32>
    %189 = math.exp %188 : vector<2x32xf32>
    %cst_59 = arith.constant 1.000000e+00 : f32
    %190 = vector.broadcast %cst_59 : f32 to vector<2x32xf32>
    %191 = arith.addf %190, %189 : vector<2x32xf32>
    %192 = arith.divf %190, %191 : vector<2x32xf32>
    %193 = vector.extract_strided_slice %180 {offsets = [0, 64], sizes = [2, 32], strides = [1, 1]} : vector<2x128xf32> to vector<2x32xf32>
    %194 = math.tanh %193 : vector<2x32xf32>
    %195 = vector.extract_strided_slice %180 {offsets = [0, 96], sizes = [2, 32], strides = [1, 1]} : vector<2x128xf32> to vector<2x32xf32>
    %196 = arith.negf %195 : vector<2x32xf32>
    %197 = math.exp %196 : vector<2x32xf32>
    %cst_60 = arith.constant 1.000000e+00 : f32
    %198 = vector.broadcast %cst_60 : f32 to vector<2x32xf32>
    %199 = arith.addf %198, %197 : vector<2x32xf32>
    %200 = arith.divf %198, %199 : vector<2x32xf32>
    %201 = arith.mulf %192, %147 : vector<2x32xf32>
    %202 = arith.mulf %186, %194 : vector<2x32xf32>
    %203 = arith.addf %201, %202 : vector<2x32xf32>
    %204 = math.tanh %203 : vector<2x32xf32>
    %205 = arith.mulf %200, %204 : vector<2x32xf32>
    %206 = arith.index_cast %c3_i32 : i32 to index
    %c0_61 = arith.constant 0 : index
    %c0_62 = arith.constant 0 : index
    %207 = vector.load %arg5[%206, %c0_61, %c0_62] : memref<8x2x32xf32, #tpu.memory_space<vmem>>, vector<1x2x32xf32>
    %208 = vector.shape_cast %207 : vector<1x2x32xf32> to vector<2x32xf32>
    %209 = vector.shape_cast %205 : vector<2x32xf32> to vector<1x2x32xf32>
    tpu.vector_store %arg5[%206, %c0_61, %c0_62], %209 {strides = array<i32>} : memref<8x2x32xf32, #tpu.memory_space<vmem>>, vector<1x2x32xf32>,
    %210 = arith.index_cast %c3_i32 : i32 to index
    %c0_63 = arith.constant 0 : index
    %c0_64 = arith.constant 0 : index
    %211 = vector.load %arg6[%210, %c0_63, %c0_64] : memref<8x2x32xf32, #tpu.memory_space<vmem>>, vector<1x2x32xf32>
    %212 = vector.shape_cast %211 : vector<1x2x32xf32> to vector<2x32xf32>
    %213 = vector.shape_cast %203 : vector<2x32xf32> to vector<1x2x32xf32>
    tpu.vector_store %arg6[%210, %c0_63, %c0_64], %213 {strides = array<i32>} : memref<8x2x32xf32, #tpu.memory_space<vmem>>, vector<1x2x32xf32>,
    %cst_65 = arith.constant dense<0.000000e+00> : vector<2x8xf32>
    %214 = tpu.matmul %205, %4, %cst_65 {dimension_numbers = #tpu.dot_dimension_numbers<[1], [0], [0], [1], [0, 0, 1, 1], [], []>} : vector<2x32xf32>, vector<32x8xf32>, vector<2x8xf32> -> vector<2x8xf32>
    %215 = vector.broadcast %5 : vector<1x8xf32> to vector<2x8xf32>
    %216 = arith.addf %214, %215 : vector<2x8xf32>
    %cst_66 = arith.constant dense<0xFF800000> : vector<8xf32>
    %217 = vector.multi_reduction <maximumf>, %216, %cst_66 [0] : vector<2x8xf32> to vector<8xf32>
    %218 = vector.shape_cast %217 : vector<8xf32> to vector<1x8xf32>
    %219 = vector.broadcast %218 : vector<1x8xf32> to vector<2x8xf32>
    %220 = arith.subf %216, %219 : vector<2x8xf32>
    %221 = math.exp %220 : vector<2x8xf32>
    %cst_67 = arith.constant dense<0.000000e+00> : vector<8xf32>
    %222 = vector.multi_reduction <add>, %221, %cst_67 [0] : vector<2x8xf32> to vector<8xf32>
    %223 = vector.shape_cast %222 : vector<8xf32> to vector<1x8xf32>
    %224 = math.log %223 : vector<1x8xf32>
    %225 = arith.addf %218, %224 : vector<1x8xf32>
    %226 = vector.broadcast %225 : vector<1x8xf32> to vector<2x8xf32>
    %227 = arith.subf %216, %226 : vector<2x8xf32>
    %228 = arith.index_cast %c3_i32 : i32 to index
    %c0_68 = arith.constant 0 : index
    %c0_69 = arith.constant 0 : index
    %229 = vector.load %arg7[%228, %c0_68, %c0_69] : memref<8x2x8xf32, #tpu.memory_space<vmem>>, vector<1x2x8xf32>
    %230 = vector.shape_cast %229 : vector<1x2x8xf32> to vector<2x8xf32>
    %231 = vector.shape_cast %227 : vector<2x8xf32> to vector<1x2x8xf32>
    tpu.vector_store %arg7[%228, %c0_68, %c0_69], %231 {strides = array<i32>} : memref<8x2x8xf32, #tpu.memory_space<vmem>>, vector<1x2x8xf32>,
    %c4_i32 = arith.constant 4 : i32
    %232 = arith.index_cast %c4_i32 : i32 to index
    %c0_70 = arith.constant 0 : index
    %c0_71 = arith.constant 0 : index
    %233 = vector.load %arg1[%232, %c0_70, %c0_71] : memref<8x2x128xf32, #tpu.memory_space<vmem>>, vector<1x2x128xf32>
    %234 = vector.shape_cast %233 : vector<1x2x128xf32> to vector<2x128xf32>
    %cst_72 = arith.constant dense<0.000000e+00> : vector<2x128xf32>
    %235 = tpu.matmul %205, %3, %cst_72 {dimension_numbers = #tpu.dot_dimension_numbers<[1], [0], [0], [1], [0, 0, 1, 1], [], []>} : vector<2x32xf32>, vector<32x128xf32>, vector<2x128xf32> -> vector<2x128xf32>
    %236 = arith.addf %234, %235 : vector<2x128xf32>
    %237 = vector.extract_strided_slice %236 {offsets = [0, 0], sizes = [2, 32], strides = [1, 1]} : vector<2x128xf32> to vector<2x32xf32>
    %238 = arith.negf %237 : vector<2x32xf32>
    %239 = math.exp %238 : vector<2x32xf32>
    %cst_73 = arith.constant 1.000000e+00 : f32
    %240 = vector.broadcast %cst_73 : f32 to vector<2x32xf32>
    %241 = arith.addf %240, %239 : vector<2x32xf32>
    %242 = arith.divf %240, %241 : vector<2x32xf32>
    %243 = vector.extract_strided_slice %236 {offsets = [0, 32], sizes = [2, 32], strides = [1, 1]} : vector<2x128xf32> to vector<2x32xf32>
    %244 = arith.negf %243 : vector<2x32xf32>
    %245 = math.exp %244 : vector<2x32xf32>
    %cst_74 = arith.constant 1.000000e+00 : f32
    %246 = vector.broadcast %cst_74 : f32 to vector<2x32xf32>
    %247 = arith.addf %246, %245 : vector<2x32xf32>
    %248 = arith.divf %246, %247 : vector<2x32xf32>
    %249 = vector.extract_strided_slice %236 {offsets = [0, 64], sizes = [2, 32], strides = [1, 1]} : vector<2x128xf32> to vector<2x32xf32>
    %250 = math.tanh %249 : vector<2x32xf32>
    %251 = vector.extract_strided_slice %236 {offsets = [0, 96], sizes = [2, 32], strides = [1, 1]} : vector<2x128xf32> to vector<2x32xf32>
    %252 = arith.negf %251 : vector<2x32xf32>
    %253 = math.exp %252 : vector<2x32xf32>
    %cst_75 = arith.constant 1.000000e+00 : f32
    %254 = vector.broadcast %cst_75 : f32 to vector<2x32xf32>
    %255 = arith.addf %254, %253 : vector<2x32xf32>
    %256 = arith.divf %254, %255 : vector<2x32xf32>
    %257 = arith.mulf %248, %203 : vector<2x32xf32>
    %258 = arith.mulf %242, %250 : vector<2x32xf32>
    %259 = arith.addf %257, %258 : vector<2x32xf32>
    %260 = math.tanh %259 : vector<2x32xf32>
    %261 = arith.mulf %256, %260 : vector<2x32xf32>
    %262 = arith.index_cast %c4_i32 : i32 to index
    %c0_76 = arith.constant 0 : index
    %c0_77 = arith.constant 0 : index
    %263 = vector.load %arg5[%262, %c0_76, %c0_77] : memref<8x2x32xf32, #tpu.memory_space<vmem>>, vector<1x2x32xf32>
    %264 = vector.shape_cast %263 : vector<1x2x32xf32> to vector<2x32xf32>
    %265 = vector.shape_cast %261 : vector<2x32xf32> to vector<1x2x32xf32>
    tpu.vector_store %arg5[%262, %c0_76, %c0_77], %265 {strides = array<i32>} : memref<8x2x32xf32, #tpu.memory_space<vmem>>, vector<1x2x32xf32>,
    %266 = arith.index_cast %c4_i32 : i32 to index
    %c0_78 = arith.constant 0 : index
    %c0_79 = arith.constant 0 : index
    %267 = vector.load %arg6[%266, %c0_78, %c0_79] : memref<8x2x32xf32, #tpu.memory_space<vmem>>, vector<1x2x32xf32>
    %268 = vector.shape_cast %267 : vector<1x2x32xf32> to vector<2x32xf32>
    %269 = vector.shape_cast %259 : vector<2x32xf32> to vector<1x2x32xf32>
    tpu.vector_store %arg6[%266, %c0_78, %c0_79], %269 {strides = array<i32>} : memref<8x2x32xf32, #tpu.memory_space<vmem>>, vector<1x2x32xf32>,
    %cst_80 = arith.constant dense<0.000000e+00> : vector<2x8xf32>
    %270 = tpu.matmul %261, %4, %cst_80 {dimension_numbers = #tpu.dot_dimension_numbers<[1], [0], [0], [1], [0, 0, 1, 1], [], []>} : vector<2x32xf32>, vector<32x8xf32>, vector<2x8xf32> -> vector<2x8xf32>
    %271 = vector.broadcast %5 : vector<1x8xf32> to vector<2x8xf32>
    %272 = arith.addf %270, %271 : vector<2x8xf32>
    %cst_81 = arith.constant dense<0xFF800000> : vector<8xf32>
    %273 = vector.multi_reduction <maximumf>, %272, %cst_81 [0] : vector<2x8xf32> to vector<8xf32>
    %274 = vector.shape_cast %273 : vector<8xf32> to vector<1x8xf32>
    %275 = vector.broadcast %274 : vector<1x8xf32> to vector<2x8xf32>
    %276 = arith.subf %272, %275 : vector<2x8xf32>
    %277 = math.exp %276 : vector<2x8xf32>
    %cst_82 = arith.constant dense<0.000000e+00> : vector<8xf32>
    %278 = vector.multi_reduction <add>, %277, %cst_82 [0] : vector<2x8xf32> to vector<8xf32>
    %279 = vector.shape_cast %278 : vector<8xf32> to vector<1x8xf32>
    %280 = math.log %279 : vector<1x8xf32>
    %281 = arith.addf %274, %280 : vector<1x8xf32>
    %282 = vector.broadcast %281 : vector<1x8xf32> to vector<2x8xf32>
    %283 = arith.subf %272, %282 : vector<2x8xf32>
    %284 = arith.index_cast %c4_i32 : i32 to index
    %c0_83 = arith.constant 0 : index
    %c0_84 = arith.constant 0 : index
    %285 = vector.load %arg7[%284, %c0_83, %c0_84] : memref<8x2x8xf32, #tpu.memory_space<vmem>>, vector<1x2x8xf32>
    %286 = vector.shape_cast %285 : vector<1x2x8xf32> to vector<2x8xf32>
    %287 = vector.shape_cast %283 : vector<2x8xf32> to vector<1x2x8xf32>
    tpu.vector_store %arg7[%284, %c0_83, %c0_84], %287 {strides = array<i32>} : memref<8x2x8xf32, #tpu.memory_space<vmem>>, vector<1x2x8xf32>,
    %c5_i32 = arith.constant 5 : i32
    %288 = arith.index_cast %c5_i32 : i32 to index
    %c0_85 = arith.constant 0 : index
    %c0_86 = arith.constant 0 : index
    %289 = vector.load %arg1[%288, %c0_85, %c0_86] : memref<8x2x128xf32, #tpu.memory_space<vmem>>, vector<1x2x128xf32>
    %290 = vector.shape_cast %289 : vector<1x2x128xf32> to vector<2x128xf32>
    %cst_87 = arith.constant dense<0.000000e+00> : vector<2x128xf32>
    %291 = tpu.matmul %261, %3, %cst_87 {dimension_numbers = #tpu.dot_dimension_numbers<[1], [0], [0], [1], [0, 0, 1, 1], [], []>} : vector<2x32xf32>, vector<32x128xf32>, vector<2x128xf32> -> vector<2x128xf32>
    %292 = arith.addf %290, %291 : vector<2x128xf32>
    %293 = vector.extract_strided_slice %292 {offsets = [0, 0], sizes = [2, 32], strides = [1, 1]} : vector<2x128xf32> to vector<2x32xf32>
    %294 = arith.negf %293 : vector<2x32xf32>
    %295 = math.exp %294 : vector<2x32xf32>
    %cst_88 = arith.constant 1.000000e+00 : f32
    %296 = vector.broadcast %cst_88 : f32 to vector<2x32xf32>
    %297 = arith.addf %296, %295 : vector<2x32xf32>
    %298 = arith.divf %296, %297 : vector<2x32xf32>
    %299 = vector.extract_strided_slice %292 {offsets = [0, 32], sizes = [2, 32], strides = [1, 1]} : vector<2x128xf32> to vector<2x32xf32>
    %300 = arith.negf %299 : vector<2x32xf32>
    %301 = math.exp %300 : vector<2x32xf32>
    %cst_89 = arith.constant 1.000000e+00 : f32
    %302 = vector.broadcast %cst_89 : f32 to vector<2x32xf32>
    %303 = arith.addf %302, %301 : vector<2x32xf32>
    %304 = arith.divf %302, %303 : vector<2x32xf32>
    %305 = vector.extract_strided_slice %292 {offsets = [0, 64], sizes = [2, 32], strides = [1, 1]} : vector<2x128xf32> to vector<2x32xf32>
    %306 = math.tanh %305 : vector<2x32xf32>
    %307 = vector.extract_strided_slice %292 {offsets = [0, 96], sizes = [2, 32], strides = [1, 1]} : vector<2x128xf32> to vector<2x32xf32>
    %308 = arith.negf %307 : vector<2x32xf32>
    %309 = math.exp %308 : vector<2x32xf32>
    %cst_90 = arith.constant 1.000000e+00 : f32
    %310 = vector.broadcast %cst_90 : f32 to vector<2x32xf32>
    %311 = arith.addf %310, %309 : vector<2x32xf32>
    %312 = arith.divf %310, %311 : vector<2x32xf32>
    %313 = arith.mulf %304, %259 : vector<2x32xf32>
    %314 = arith.mulf %298, %306 : vector<2x32xf32>
    %315 = arith.addf %313, %314 : vector<2x32xf32>
    %316 = math.tanh %315 : vector<2x32xf32>
    %317 = arith.mulf %312, %316 : vector<2x32xf32>
    %318 = arith.index_cast %c5_i32 : i32 to index
    %c0_91 = arith.constant 0 : index
    %c0_92 = arith.constant 0 : index
    %319 = vector.load %arg5[%318, %c0_91, %c0_92] : memref<8x2x32xf32, #tpu.memory_space<vmem>>, vector<1x2x32xf32>
    %320 = vector.shape_cast %319 : vector<1x2x32xf32> to vector<2x32xf32>
    %321 = vector.shape_cast %317 : vector<2x32xf32> to vector<1x2x32xf32>
    tpu.vector_store %arg5[%318, %c0_91, %c0_92], %321 {strides = array<i32>} : memref<8x2x32xf32, #tpu.memory_space<vmem>>, vector<1x2x32xf32>,
    %322 = arith.index_cast %c5_i32 : i32 to index
    %c0_93 = arith.constant 0 : index
    %c0_94 = arith.constant 0 : index
    %323 = vector.load %arg6[%322, %c0_93, %c0_94] : memref<8x2x32xf32, #tpu.memory_space<vmem>>, vector<1x2x32xf32>
    %324 = vector.shape_cast %323 : vector<1x2x32xf32> to vector<2x32xf32>
    %325 = vector.shape_cast %315 : vector<2x32xf32> to vector<1x2x32xf32>
    tpu.vector_store %arg6[%322, %c0_93, %c0_94], %325 {strides = array<i32>} : memref<8x2x32xf32, #tpu.memory_space<vmem>>, vector<1x2x32xf32>,
    %cst_95 = arith.constant dense<0.000000e+00> : vector<2x8xf32>
    %326 = tpu.matmul %317, %4, %cst_95 {dimension_numbers = #tpu.dot_dimension_numbers<[1], [0], [0], [1], [0, 0, 1, 1], [], []>} : vector<2x32xf32>, vector<32x8xf32>, vector<2x8xf32> -> vector<2x8xf32>
    %327 = vector.broadcast %5 : vector<1x8xf32> to vector<2x8xf32>
    %328 = arith.addf %326, %327 : vector<2x8xf32>
    %cst_96 = arith.constant dense<0xFF800000> : vector<8xf32>
    %329 = vector.multi_reduction <maximumf>, %328, %cst_96 [0] : vector<2x8xf32> to vector<8xf32>
    %330 = vector.shape_cast %329 : vector<8xf32> to vector<1x8xf32>
    %331 = vector.broadcast %330 : vector<1x8xf32> to vector<2x8xf32>
    %332 = arith.subf %328, %331 : vector<2x8xf32>
    %333 = math.exp %332 : vector<2x8xf32>
    %cst_97 = arith.constant dense<0.000000e+00> : vector<8xf32>
    %334 = vector.multi_reduction <add>, %333, %cst_97 [0] : vector<2x8xf32> to vector<8xf32>
    %335 = vector.shape_cast %334 : vector<8xf32> to vector<1x8xf32>
    %336 = math.log %335 : vector<1x8xf32>
    %337 = arith.addf %330, %336 : vector<1x8xf32>
    %338 = vector.broadcast %337 : vector<1x8xf32> to vector<2x8xf32>
    %339 = arith.subf %328, %338 : vector<2x8xf32>
    %340 = arith.index_cast %c5_i32 : i32 to index
    %c0_98 = arith.constant 0 : index
    %c0_99 = arith.constant 0 : index
    %341 = vector.load %arg7[%340, %c0_98, %c0_99] : memref<8x2x8xf32, #tpu.memory_space<vmem>>, vector<1x2x8xf32>
    %342 = vector.shape_cast %341 : vector<1x2x8xf32> to vector<2x8xf32>
    %343 = vector.shape_cast %339 : vector<2x8xf32> to vector<1x2x8xf32>
    tpu.vector_store %arg7[%340, %c0_98, %c0_99], %343 {strides = array<i32>} : memref<8x2x8xf32, #tpu.memory_space<vmem>>, vector<1x2x8xf32>,
    %c6_i32 = arith.constant 6 : i32
    %344 = arith.index_cast %c6_i32 : i32 to index
    %c0_100 = arith.constant 0 : index
    %c0_101 = arith.constant 0 : index
    %345 = vector.load %arg1[%344, %c0_100, %c0_101] : memref<8x2x128xf32, #tpu.memory_space<vmem>>, vector<1x2x128xf32>
    %346 = vector.shape_cast %345 : vector<1x2x128xf32> to vector<2x128xf32>
    %cst_102 = arith.constant dense<0.000000e+00> : vector<2x128xf32>
    %347 = tpu.matmul %317, %3, %cst_102 {dimension_numbers = #tpu.dot_dimension_numbers<[1], [0], [0], [1], [0, 0, 1, 1], [], []>} : vector<2x32xf32>, vector<32x128xf32>, vector<2x128xf32> -> vector<2x128xf32>
    %348 = arith.addf %346, %347 : vector<2x128xf32>
    %349 = vector.extract_strided_slice %348 {offsets = [0, 0], sizes = [2, 32], strides = [1, 1]} : vector<2x128xf32> to vector<2x32xf32>
    %350 = arith.negf %349 : vector<2x32xf32>
    %351 = math.exp %350 : vector<2x32xf32>
    %cst_103 = arith.constant 1.000000e+00 : f32
    %352 = vector.broadcast %cst_103 : f32 to vector<2x32xf32>
    %353 = arith.addf %352, %351 : vector<2x32xf32>
    %354 = arith.divf %352, %353 : vector<2x32xf32>
    %355 = vector.extract_strided_slice %348 {offsets = [0, 32], sizes = [2, 32], strides = [1, 1]} : vector<2x128xf32> to vector<2x32xf32>
    %356 = arith.negf %355 : vector<2x32xf32>
    %357 = math.exp %356 : vector<2x32xf32>
    %cst_104 = arith.constant 1.000000e+00 : f32
    %358 = vector.broadcast %cst_104 : f32 to vector<2x32xf32>
    %359 = arith.addf %358, %357 : vector<2x32xf32>
    %360 = arith.divf %358, %359 : vector<2x32xf32>
    %361 = vector.extract_strided_slice %348 {offsets = [0, 64], sizes = [2, 32], strides = [1, 1]} : vector<2x128xf32> to vector<2x32xf32>
    %362 = math.tanh %361 : vector<2x32xf32>
    %363 = vector.extract_strided_slice %348 {offsets = [0, 96], sizes = [2, 32], strides = [1, 1]} : vector<2x128xf32> to vector<2x32xf32>
    %364 = arith.negf %363 : vector<2x32xf32>
    %365 = math.exp %364 : vector<2x32xf32>
    %cst_105 = arith.constant 1.000000e+00 : f32
    %366 = vector.broadcast %cst_105 : f32 to vector<2x32xf32>
    %367 = arith.addf %366, %365 : vector<2x32xf32>
    %368 = arith.divf %366, %367 : vector<2x32xf32>
    %369 = arith.mulf %360, %315 : vector<2x32xf32>
    %370 = arith.mulf %354, %362 : vector<2x32xf32>
    %371 = arith.addf %369, %370 : vector<2x32xf32>
    %372 = math.tanh %371 : vector<2x32xf32>
    %373 = arith.mulf %368, %372 : vector<2x32xf32>
    %374 = arith.index_cast %c6_i32 : i32 to index
    %c0_106 = arith.constant 0 : index
    %c0_107 = arith.constant 0 : index
    %375 = vector.load %arg5[%374, %c0_106, %c0_107] : memref<8x2x32xf32, #tpu.memory_space<vmem>>, vector<1x2x32xf32>
    %376 = vector.shape_cast %375 : vector<1x2x32xf32> to vector<2x32xf32>
    %377 = vector.shape_cast %373 : vector<2x32xf32> to vector<1x2x32xf32>
    tpu.vector_store %arg5[%374, %c0_106, %c0_107], %377 {strides = array<i32>} : memref<8x2x32xf32, #tpu.memory_space<vmem>>, vector<1x2x32xf32>,
    %378 = arith.index_cast %c6_i32 : i32 to index
    %c0_108 = arith.constant 0 : index
    %c0_109 = arith.constant 0 : index
    %379 = vector.load %arg6[%378, %c0_108, %c0_109] : memref<8x2x32xf32, #tpu.memory_space<vmem>>, vector<1x2x32xf32>
    %380 = vector.shape_cast %379 : vector<1x2x32xf32> to vector<2x32xf32>
    %381 = vector.shape_cast %371 : vector<2x32xf32> to vector<1x2x32xf32>
    tpu.vector_store %arg6[%378, %c0_108, %c0_109], %381 {strides = array<i32>} : memref<8x2x32xf32, #tpu.memory_space<vmem>>, vector<1x2x32xf32>,
    %cst_110 = arith.constant dense<0.000000e+00> : vector<2x8xf32>
    %382 = tpu.matmul %373, %4, %cst_110 {dimension_numbers = #tpu.dot_dimension_numbers<[1], [0], [0], [1], [0, 0, 1, 1], [], []>} : vector<2x32xf32>, vector<32x8xf32>, vector<2x8xf32> -> vector<2x8xf32>
    %383 = vector.broadcast %5 : vector<1x8xf32> to vector<2x8xf32>
    %384 = arith.addf %382, %383 : vector<2x8xf32>
    %cst_111 = arith.constant dense<0xFF800000> : vector<8xf32>
    %385 = vector.multi_reduction <maximumf>, %384, %cst_111 [0] : vector<2x8xf32> to vector<8xf32>
    %386 = vector.shape_cast %385 : vector<8xf32> to vector<1x8xf32>
    %387 = vector.broadcast %386 : vector<1x8xf32> to vector<2x8xf32>
    %388 = arith.subf %384, %387 : vector<2x8xf32>
    %389 = math.exp %388 : vector<2x8xf32>
    %cst_112 = arith.constant dense<0.000000e+00> : vector<8xf32>
    %390 = vector.multi_reduction <add>, %389, %cst_112 [0] : vector<2x8xf32> to vector<8xf32>
    %391 = vector.shape_cast %390 : vector<8xf32> to vector<1x8xf32>
    %392 = math.log %391 : vector<1x8xf32>
    %393 = arith.addf %386, %392 : vector<1x8xf32>
    %394 = vector.broadcast %393 : vector<1x8xf32> to vector<2x8xf32>
    %395 = arith.subf %384, %394 : vector<2x8xf32>
    %396 = arith.index_cast %c6_i32 : i32 to index
    %c0_113 = arith.constant 0 : index
    %c0_114 = arith.constant 0 : index
    %397 = vector.load %arg7[%396, %c0_113, %c0_114] : memref<8x2x8xf32, #tpu.memory_space<vmem>>, vector<1x2x8xf32>
    %398 = vector.shape_cast %397 : vector<1x2x8xf32> to vector<2x8xf32>
    %399 = vector.shape_cast %395 : vector<2x8xf32> to vector<1x2x8xf32>
    tpu.vector_store %arg7[%396, %c0_113, %c0_114], %399 {strides = array<i32>} : memref<8x2x8xf32, #tpu.memory_space<vmem>>, vector<1x2x8xf32>,
    %c7_i32 = arith.constant 7 : i32
    %400 = arith.index_cast %c7_i32 : i32 to index
    %c0_115 = arith.constant 0 : index
    %c0_116 = arith.constant 0 : index
    %401 = vector.load %arg1[%400, %c0_115, %c0_116] : memref<8x2x128xf32, #tpu.memory_space<vmem>>, vector<1x2x128xf32>
    %402 = vector.shape_cast %401 : vector<1x2x128xf32> to vector<2x128xf32>
    %cst_117 = arith.constant dense<0.000000e+00> : vector<2x128xf32>
    %403 = tpu.matmul %373, %3, %cst_117 {dimension_numbers = #tpu.dot_dimension_numbers<[1], [0], [0], [1], [0, 0, 1, 1], [], []>} : vector<2x32xf32>, vector<32x128xf32>, vector<2x128xf32> -> vector<2x128xf32>
    %404 = arith.addf %402, %403 : vector<2x128xf32>
    %405 = vector.extract_strided_slice %404 {offsets = [0, 0], sizes = [2, 32], strides = [1, 1]} : vector<2x128xf32> to vector<2x32xf32>
    %406 = arith.negf %405 : vector<2x32xf32>
    %407 = math.exp %406 : vector<2x32xf32>
    %cst_118 = arith.constant 1.000000e+00 : f32
    %408 = vector.broadcast %cst_118 : f32 to vector<2x32xf32>
    %409 = arith.addf %408, %407 : vector<2x32xf32>
    %410 = arith.divf %408, %409 : vector<2x32xf32>
    %411 = vector.extract_strided_slice %404 {offsets = [0, 32], sizes = [2, 32], strides = [1, 1]} : vector<2x128xf32> to vector<2x32xf32>
    %412 = arith.negf %411 : vector<2x32xf32>
    %413 = math.exp %412 : vector<2x32xf32>
    %cst_119 = arith.constant 1.000000e+00 : f32
    %414 = vector.broadcast %cst_119 : f32 to vector<2x32xf32>
    %415 = arith.addf %414, %413 : vector<2x32xf32>
    %416 = arith.divf %414, %415 : vector<2x32xf32>
    %417 = vector.extract_strided_slice %404 {offsets = [0, 64], sizes = [2, 32], strides = [1, 1]} : vector<2x128xf32> to vector<2x32xf32>
    %418 = math.tanh %417 : vector<2x32xf32>
    %419 = vector.extract_strided_slice %404 {offsets = [0, 96], sizes = [2, 32], strides = [1, 1]} : vector<2x128xf32> to vector<2x32xf32>
    %420 = arith.negf %419 : vector<2x32xf32>
    %421 = math.exp %420 : vector<2x32xf32>
    %cst_120 = arith.constant 1.000000e+00 : f32
    %422 = vector.broadcast %cst_120 : f32 to vector<2x32xf32>
    %423 = arith.addf %422, %421 : vector<2x32xf32>
    %424 = arith.divf %422, %423 : vector<2x32xf32>
    %425 = arith.mulf %416, %371 : vector<2x32xf32>
    %426 = arith.mulf %410, %418 : vector<2x32xf32>
    %427 = arith.addf %425, %426 : vector<2x32xf32>
    %428 = math.tanh %427 : vector<2x32xf32>
    %429 = arith.mulf %424, %428 : vector<2x32xf32>
    %430 = arith.index_cast %c7_i32 : i32 to index
    %c0_121 = arith.constant 0 : index
    %c0_122 = arith.constant 0 : index
    %431 = vector.load %arg5[%430, %c0_121, %c0_122] : memref<8x2x32xf32, #tpu.memory_space<vmem>>, vector<1x2x32xf32>
    %432 = vector.shape_cast %431 : vector<1x2x32xf32> to vector<2x32xf32>
    %433 = vector.shape_cast %429 : vector<2x32xf32> to vector<1x2x32xf32>
    tpu.vector_store %arg5[%430, %c0_121, %c0_122], %433 {strides = array<i32>} : memref<8x2x32xf32, #tpu.memory_space<vmem>>, vector<1x2x32xf32>,
    %434 = arith.index_cast %c7_i32 : i32 to index
    %c0_123 = arith.constant 0 : index
    %c0_124 = arith.constant 0 : index
    %435 = vector.load %arg6[%434, %c0_123, %c0_124] : memref<8x2x32xf32, #tpu.memory_space<vmem>>, vector<1x2x32xf32>
    %436 = vector.shape_cast %435 : vector<1x2x32xf32> to vector<2x32xf32>
    %437 = vector.shape_cast %427 : vector<2x32xf32> to vector<1x2x32xf32>
    tpu.vector_store %arg6[%434, %c0_123, %c0_124], %437 {strides = array<i32>} : memref<8x2x32xf32, #tpu.memory_space<vmem>>, vector<1x2x32xf32>,
    %cst_125 = arith.constant dense<0.000000e+00> : vector<2x8xf32>
    %438 = tpu.matmul %429, %4, %cst_125 {dimension_numbers = #tpu.dot_dimension_numbers<[1], [0], [0], [1], [0, 0, 1, 1], [], []>} : vector<2x32xf32>, vector<32x8xf32>, vector<2x8xf32> -> vector<2x8xf32>
    %439 = vector.broadcast %5 : vector<1x8xf32> to vector<2x8xf32>
    %440 = arith.addf %438, %439 : vector<2x8xf32>
    %cst_126 = arith.constant dense<0xFF800000> : vector<8xf32>
    %441 = vector.multi_reduction <maximumf>, %440, %cst_126 [0] : vector<2x8xf32> to vector<8xf32>
    %442 = vector.shape_cast %441 : vector<8xf32> to vector<1x8xf32>
    %443 = vector.broadcast %442 : vector<1x8xf32> to vector<2x8xf32>
    %444 = arith.subf %440, %443 : vector<2x8xf32>
    %445 = math.exp %444 : vector<2x8xf32>
    %cst_127 = arith.constant dense<0.000000e+00> : vector<8xf32>
    %446 = vector.multi_reduction <add>, %445, %cst_127 [0] : vector<2x8xf32> to vector<8xf32>
    %447 = vector.shape_cast %446 : vector<8xf32> to vector<1x8xf32>
    %448 = math.log %447 : vector<1x8xf32>
    %449 = arith.addf %442, %448 : vector<1x8xf32>
    %450 = vector.broadcast %449 : vector<1x8xf32> to vector<2x8xf32>
    %451 = arith.subf %440, %450 : vector<2x8xf32>
    %452 = arith.index_cast %c7_i32 : i32 to index
    %c0_128 = arith.constant 0 : index
    %c0_129 = arith.constant 0 : index
    %453 = vector.load %arg7[%452, %c0_128, %c0_129] : memref<8x2x8xf32, #tpu.memory_space<vmem>>, vector<1x2x8xf32>
    %454 = vector.shape_cast %453 : vector<1x2x8xf32> to vector<2x8xf32>
    %455 = vector.shape_cast %451 : vector<2x8xf32> to vector<1x2x8xf32>
    tpu.vector_store %arg7[%452, %c0_128, %c0_129], %455 {strides = array<i32>} : memref<8x2x8xf32, #tpu.memory_space<vmem>>, vector<1x2x8xf32>,
    %c8_i32 = arith.constant 8 : i32
    %c0_130 = arith.constant 0 : index
    %c0_131 = arith.constant 0 : index
    %456 = vector.load %arg8[%c0_130, %c0_131] : memref<2x32xf32, #tpu.memory_space<vmem>>, vector<2x32xf32>
    tpu.vector_store %arg8[%c0_130, %c0_131], %429 {strides = array<i32>} : memref<2x32xf32, #tpu.memory_space<vmem>>, vector<2x32xf32>,
    %c0_132 = arith.constant 0 : index
    %c0_133 = arith.constant 0 : index
    %457 = vector.load %arg9[%c0_132, %c0_133] : memref<2x32xf32, #tpu.memory_space<vmem>>, vector<2x32xf32>
    tpu.vector_store %arg9[%c0_132, %c0_133], %427 {strides = array<i32>} : memref<2x32xf32, #tpu.memory_space<vmem>>, vector<2x32xf32>,
    return
  }
  func.func @transform_0(%arg0: i32) -> (i32, i32, i32) {
    %c0_i32 = arith.constant 0 : i32
    %c0_i32_0 = arith.constant 0 : i32
    %c0_i32_1 = arith.constant 0 : i32
    return %arg0, %c0_i32, %c0_i32_0 : i32, i32, i32
  }
  func.func @transform_1(%arg0: i32) -> (i32, i32) {
    %c0_i32 = arith.constant 0 : i32
    %c0_i32_0 = arith.constant 0 : i32
    %c0_i32_1 = arith.constant 0 : i32
    return %c0_i32, %c0_i32_0 : i32, i32
  }
  func.func @transform_2(%arg0: i32) -> (i32, i32) {
    %c0_i32 = arith.constant 0 : i32
    %c0_i32_0 = arith.constant 0 : i32
    %c0_i32_1 = arith.constant 0 : i32
    return %c0_i32, %c0_i32_0 : i32, i32
  }
  func.func @transform_3(%arg0: i32) -> (i32, i32) {
    %c0_i32 = arith.constant 0 : i32
    %c0_i32_0 = arith.constant 0 : i32
    %c0_i32_1 = arith.constant 0 : i32
    return %c0_i32, %c0_i32_0 : i32, i32
  }
  func.func @transform_4(%arg0: i32) -> (i32, i32, i32) {
    %c0_i32 = arith.constant 0 : i32
    %c0_i32_0 = arith.constant 0 : i32
    %c0_i32_1 = arith.constant 0 : i32
    return %arg0, %c0_i32, %c0_i32_0 : i32, i32, i32
  }
  func.func @transform_5(%arg0: i32) -> (i32, i32, i32) {
    %c0_i32 = arith.constant 0 : i32
    %c0_i32_0 = arith.constant 0 : i32
    %c0_i32_1 = arith.constant 0 : i32
    return %arg0, %c0_i32, %c0_i32_0 : i32, i32, i32
  }
  func.func @transform_6(%arg0: i32) -> (i32, i32, i32) {
    %c0_i32 = arith.constant 0 : i32
    %c0_i32_0 = arith.constant 0 : i32
    %c0_i32_1 = arith.constant 0 : i32
    return %arg0, %c0_i32, %c0_i32_0 : i32, i32, i32
  }
}

</mosaic_0001>

<llo_original>
// kernel: custom_lstm_forward.1
$region0: #{custom_lstm_forward.1}
  #allocation0 [shape = 'u32[]', space=smem, size = 0x4, offset = 0x4, fixed_abs, tag = 'smem constant byte address 0x4 - core index']
  #allocation1 [shape = 'u32[144,128]{1,0:T(1,128)}', space=vmem, size = 0x12000, scoped, tag = 'internal scratch']
  #allocation2 [shape = 'f32[2,32]{1,0:T(2,128)}', space=vmem, size = 0x400, scoped, tag = 'scratch operand']
  #allocation3 [shape = 'f32[2,32]{1,0:T(2,128)}', space=vmem, size = 0x400, scoped, tag = 'scratch operand']
  %s0 = inlined_call_operand.vmem [shape: f32[8,2,128], index: 0, kind: input, shape index: {}]
  %s1 = inlined_call_operand.vmem [shape: f32[32,128], index: 1, kind: input, shape index: {}]
  %s2 = inlined_call_operand.vmem [shape: f32[32,8], index: 2, kind: input, shape index: {}]
  %s3 = inlined_call_operand.vmem [shape: f32[1,8], index: 3, kind: input, shape index: {}]
  %s4 = inlined_call_operand.hbm [shape: f32[8,2,32], index: 4, kind: output, shape index: {0}]
  %s5 = inlined_call_operand.hbm [shape: f32[8,2,32], index: 5, kind: output, shape index: {1}]
  %s6 = inlined_call_operand.hbm [shape: f32[8,2,8], index: 6, kind: output, shape index: {2}]
  %7 = xla_tuple %s4, %s5, %s6
  %s8 = sld [smem:[#allocation0]]
  $region46: #{custom_lstm_forward.1} parent=0
    _
  %s10 = ssub.s32 1, %s8
  %s11 = scalar_select 0, %s10, %s8
  $region1: #{custom_lstm_forward.1} parent=0
    #allocation4 [shape = 'u8[8192]{0}', space=vmem, size = 0x2000, scoped, tag = 'output window, operand 0, single buffered']
    #allocation5 [shape = 's32[1]{0}', space=sflag, size = 0x4, scoped, tag = 'scoped memory for custom_lstm_forward.1']
    #allocation6 [shape = 'u8[8192]{0}', space=vmem, size = 0x2000, scoped, tag = 'output window, operand 1, single buffered']
    #allocation7 [shape = 's32[1]{0}', space=sflag, size = 0x4, scoped, tag = 'scoped memory for custom_lstm_forward.1']
    #allocation8 [shape = 'u8[8192]{0}', space=vmem, size = 0x2000, scoped, tag = 'output window, operand 2, single buffered']
    %12 = vsyncpa [#allocation5], 0
    %13 = vsyncpa [#allocation7], 0
    // Predicated region
    $region2: #{custom_lstm_forward.1} parent=1 // pred_check
      _
    $region3: #{custom_lstm_forward.1} parent=1 // pred_check_branch
      %15 = sbr.rel (0) target = $region5
    $region4: #{custom_lstm_forward.1} parent=1 // pred_region
      _
    $region5: #{custom_lstm_forward.1} parent=1 // pred_fallthru
      _
    // Predicated region
    $region6: #{custom_lstm_forward.1} parent=1 // pred_check
      _
    $region7: #{custom_lstm_forward.1} parent=1 // pred_check_branch
      %17 = sbr.rel (0) target = $region9
    $region8: #{custom_lstm_forward.1} parent=1 // pred_region
      _
    $region9: #{custom_lstm_forward.1} parent=1 // pred_fallthru
      _
    // Predicated region
    $region10: #{custom_lstm_forward.1} parent=1 // pred_check
      _
    $region11: #{custom_lstm_forward.1} parent=1 // pred_check_branch
      %19 = sbr.rel (0) target = $region13
    $region12: #{custom_lstm_forward.1} parent=1 // pred_region
      _
    $region13: #{custom_lstm_forward.1} parent=1 // pred_fallthru
      _
    // Predicated region
    $region14: #{custom_lstm_forward.1} parent=1 // pred_check
      _
    $region15: #{custom_lstm_forward.1} parent=1 // pred_check_branch
      %21 = sbr.rel (0) target = $region17
    $region16: #{custom_lstm_forward.1} parent=1 // pred_region
      _
    $region17: #{custom_lstm_forward.1} parent=1 // pred_fallthru
      _
    %p22 = scmp.eq.s32.totalorder 0, 0
    // Predicated region
    $region18: #{custom_lstm_forward.1} parent=1 // pred_check
      %p23 = pneg %p22
    $region19: #{custom_lstm_forward.1} parent=1 // pred_check_branch
      %25 = sbr.rel (%p23) target = $region21
    $region20: #{custom_lstm_forward.1} parent=1 // pred_region
      %vm26 = vcmask 254976
      %27 = vst.msk [vmem:[#allocation2] sm:$0x3] %vm26, 0.0
      %28 = vst.msk [vmem:[#allocation3] sm:$0x3] %vm26, 0.0
    $region21: #{custom_lstm_forward.1} parent=1 // pred_fallthru
      _
    %v29 = vld [vmem:[%s1] sm:$0xff]
    %v30 = vld [vmem:[%s1 + $0x8] sm:$0xff]
    %v31 = vld [vmem:[%s1 + $0x10] sm:$0xff]
    %v32 = vld [vmem:[%s1 + $0x18] sm:$0xff]
    %v33 = vld [vmem:[%s2] sm:$0xff]
    %v34 = vld [vmem:[%s2 + $0x8] sm:$0xff]
    %v35 = vld [vmem:[%s2 + $0x10] sm:$0xff]
    %v36 = vld [vmem:[%s2 + $0x18] sm:$0xff]
    %v37 = vld [vmem:[%s3] sm:$0x1]
    %v38 = vld [vmem:[#allocation2] sm:$0x3]
    %v39 = vld [vmem:[#allocation3] sm:$0x3]
    %v40 = vld [vmem:[%s0] sm:$0x3]
    %vm41 = vcmask 261120
    %v43 = vsel %vm41, %v38, 0
    %45 = vmatprep.subr.mxu0 0.0
    %46 = vmatpush1.msra.mxu0 %v29
    %47 = vmatprep.subr.mxu0 0.0
    %48 = vmatpush1.msra.mxu0 %v30
    %49 = vmatprep.subr.mxu0 0.0
    %50 = vmatpush1.msra.mxu0 %v31
    %51 = vmatprep.subr.mxu0 0.0
    %52 = vmatpush1.msra.mxu0 %v32
    %53 = vmatprep.subr.mxu0 0.0
    %54 = vmatpush1.msra.mxu0 0.0
    %55 = vmatprep.subr.mxu0 0.0
    %56 = vmatpush1.msra.mxu0 0.0
    %57 = vmatprep.subr.mxu0 0.0
    %58 = vmatpush1.msra.mxu0 0.0
    %59 = vmatprep.subr.mxu0 0.0
    %60 = vmatpush1.msra.mxu0 0.0
    %61 = vmatprep.subr.mxu0 0.0
    %62 = vmatpush1.msra.mxu0 0.0
    %63 = vmatprep.subr.mxu0 0.0
    %64 = vmatpush1.msra.mxu0 0.0
    %65 = vmatprep.subr.mxu0 0.0
    %66 = vmatpush1.msra.mxu0 0.0
    %67 = vmatprep.subr.mxu0 0.0
    %68 = vmatpush1.msra.mxu0 0.0
    %69 = vmatprep.subr.mxu0 0.0
    %70 = vmatpush1.msra.mxu0 0.0
    %71 = vmatprep.subr.mxu0 0.0
    %72 = vmatpush1.msra.mxu0 0.0
    %73 = vmatprep.subr.mxu0 0.0
    %74 = vmatpush1.msra.mxu0 0.0
    %75 = vmatprep.subr.mxu0 0.0
    %76 = vmatpush1.msra.mxu0 0.0
    %77 = vmatprep.subr.mxu0 0.0
    %78 = vmatpush1.msra.mxu0 0.0
    %79 = vmatprep.subr.mxu0 0.0
    %80 = vmatpush1.msra.mxu0 0.0
    %81 = vmatprep.subr.mxu0 0.0
    %82 = vmatpush1.msra.mxu0 0.0
    %83 = vmatprep.subr.mxu0 0.0
    %84 = vmatpush1.msra.mxu0 0.0
    %85 = vmatprep.subr.mxu0 0.0
    %86 = vmatpush1.msra.mxu0 0.0
    %87 = vmatprep.subr.mxu0 0.0
    %88 = vmatpush1.msra.mxu0 0.0
    %89 = vmatprep.subr.mxu0 0.0
    %90 = vmatpush1.msra.mxu0 0.0
    %91 = vmatprep.subr.mxu0 0.0
    %92 = vmatpush1.msra.mxu0 0.0
    %93 = vmatprep.subr.mxu0 0.0
    %94 = vmatpush1.msra.mxu0 0.0
    %95 = vmatprep.subr.mxu0 0.0
    %96 = vmatpush1.msra.mxu0 0.0
    %97 = vmatprep.subr.mxu0 0.0
    %98 = vmatpush1.msra.mxu0 0.0
    %99 = vmatprep.subr.mxu0 0.0
    %100 = vmatpush1.msra.mxu0 0.0
    %101 = vmatprep.subr.mxu0 0.0
    %102 = vmatpush1.msra.mxu0 0.0
    %103 = vmatprep.subr.mxu0 0.0
    %104 = vmatpush1.msra.mxu0 0.0
    %105 = vmatprep.subr.mxu0 0.0
    %106 = vmatpush1.msra.mxu0 0.0
    %107 = vmatprep.subr.mxu0 0.0
    %108 = vmatpush1.msra.mxu0 0.0
    %109 = vmatprep.mubr.f32.mxu0 0.0
    %110 = vmatmul.mubr.f32.gmra.mrb[0].mxu0 %v43
    %v111 = vpop.f32.mrb[0].mxu0
    %v112 = vadd.f32 0.0, %v111
    %v113 = vpop.f32.mrb[0].mxu0
    %114 = vdwg.mxu0
    %v115 = vadd.f32 %v40, %v112
    %v116 = vxor.u32 %v115, 2147483648
    %v117 = vmul.f32 %v116, 1.442695
    %v118 = vpow.pop %v117
    %v119 = vadd.f32 %v118, 1.0
    %v120 = vrcp.pop %v119
    %v121 = vmul.f32 1.0, %v120
    %v122 = vtanh.pop %v115
    %124 = vrot.lane.b32.xlu0 %v39, 32
    %v125 = vpop.permute.xlu0 %124
    %v127 = vmul.f32 %v121, %v125
    %129 = vrot.lane.b32.xlu0 %v122, 64
    %v130 = vpop.permute.xlu0 %129
    %v132 = vmul.f32 %v121, %v130
    %134 = vrot.lane.b32.xlu0 %v132, 32
    %v135 = vpop.permute.xlu0 %134
    %v137 = vadd.f32 %v127, %v135
    %v138 = vtanh.pop %v137
    %140 = vrot.lane.b32.xlu0 %v138, 64
    %v141 = vpop.permute.xlu0 %140
    %v143 = vmul.f32 %v121, %v141
    %145 = vrot.lane.b32.xlu0 %v143, 32
    %v146 = vpop.permute.xlu0 %145
    %vm148 = vcmask 254976
    %149 = vst.msk [vmem:[#allocation4] sm:$0x3] %vm148, %v146
    %151 = vrot.lane.b32.xlu0 %v137, 96
    %v152 = vpop.permute.xlu0 %151
    %154 = vst.msk [vmem:[#allocation6] sm:$0x3] %vm148, %v152
    %v156 = vlaneseq
    %v157 = vshrl.u32 %v156, 7
    %v158 = vsub.s32 0, %v157
    %v159 = vrot.slane %v37, %v158
    %v161 = vsel %vm41, %v146, 0
    %163 = vmatprep.subr.mxu0 0.0
    %164 = vmatpush1.msra.mxu0 %v33
    %165 = vmatprep.subr.mxu0 0.0
    %166 = vmatpush1.msra.mxu0 %v34
    %167 = vmatprep.subr.mxu0 0.0
    %168 = vmatpush1.msra.mxu0 %v35
    %169 = vmatprep.subr.mxu0 0.0
    %170 = vmatpush1.msra.mxu0 %v36
    %171 = vmatprep.subr.mxu0 0.0
    %172 = vmatpush1.msra.mxu0 0.0
    %173 = vmatprep.subr.mxu0 0.0
    %174 = vmatpush1.msra.mxu0 0.0
    %175 = vmatprep.subr.mxu0 0.0
    %176 = vmatpush1.msra.mxu0 0.0
    %177 = vmatprep.subr.mxu0 0.0
    %178 = vmatpush1.msra.mxu0 0.0
    %179 = vmatprep.subr.mxu0 0.0
    %180 = vmatpush1.msra.mxu0 0.0
    %181 = vmatprep.subr.mxu0 0.0
    %182 = vmatpush1.msra.mxu0 0.0
    %183 = vmatprep.subr.mxu0 0.0
    %184 = vmatpush1.msra.mxu0 0.0
    %185 = vmatprep.subr.mxu0 0.0
    %186 = vmatpush1.msra.mxu0 0.0
    %187 = vmatprep.subr.mxu0 0.0
    %188 = vmatpush1.msra.mxu0 0.0
    %189 = vmatprep.subr.mxu0 0.0
    %190 = vmatpush1.msra.mxu0 0.0
    %191 = vmatprep.subr.mxu0 0.0
    %192 = vmatpush1.msra.mxu0 0.0
    %193 = vmatprep.subr.mxu0 0.0
    %194 = vmatpush1.msra.mxu0 0.0
    %195 = vmatprep.subr.mxu0 0.0
    %196 = vmatpush1.msra.mxu0 0.0
    %197 = vmatprep.subr.mxu0 0.0
    %198 = vmatpush1.msra.mxu0 0.0
    %199 = vmatprep.subr.mxu0 0.0
    %200 = vmatpush1.msra.mxu0 0.0
    %201 = vmatprep.subr.mxu0 0.0
    %202 = vmatpush1.msra.mxu0 0.0
    %203 = vmatprep.subr.mxu0 0.0
    %204 = vmatpush1.msra.mxu0 0.0
    %205 = vmatprep.subr.mxu0 0.0
    %206 = vmatpush1.msra.mxu0 0.0
    %207 = vmatprep.subr.mxu0 0.0
    %208 = vmatpush1.msra.mxu0 0.0
    %209 = vmatprep.subr.mxu0 0.0
    %210 = vmatpush1.msra.mxu0 0.0
    %211 = vmatprep.subr.mxu0 0.0
    %212 = vmatpush1.msra.mxu0 0.0
    %213 = vmatprep.subr.mxu0 0.0
    %214 = vmatpush1.msra.mxu0 0.0
    %215 = vmatprep.subr.mxu0 0.0
    %216 = vmatpush1.msra.mxu0 0.0
    %217 = vmatprep.subr.mxu0 0.0
    %218 = vmatpush1.msra.mxu0 0.0
    %219 = vmatprep.subr.mxu0 0.0
    %220 = vmatpush1.msra.mxu0 0.0
    %221 = vmatprep.subr.mxu0 0.0
    %222 = vmatpush1.msra.mxu0 0.0
    %223 = vmatprep.subr.mxu0 0.0
    %224 = vmatpush1.msra.mxu0 0.0
    %225 = vmatprep.subr.mxu0 0.0
    %226 = vmatpush1.msra.mxu0 0.0
    %227 = vmatprep.mubr.f32.mxu0 0.0
    %228 = vmatmul.mubr.f32.gmra.mrb[0].mxu0 %v161
    %v229 = vpop.f32.mrb[0].mxu0
    %v230 = vadd.f32 %v159, %v229
    %v231 = vpop.f32.mrb[0].mxu0
    %232 = vdwg.mxu0
    %vm233 = vcmask 58368
    %v234 = vsel %vm233, %v230, -inf
    %v235 = vrot.slane %v234, 4
    %v236 = vmax.f32 %v234, %v235
    %v237 = vrot.slane %v236, 2
    %v238 = vmax.f32 %v236, %v237
    %v239 = vrot.slane %v238, 1
    %v240 = vmax.f32 %v238, %v239
    %v241 = vsub.f32 %v230, %v240
    %v242 = vmul.f32 %v241, 1.442695
    %v243 = vpow.pop %v242
    %v244 = vsel %vm233, %v243, 0.0
    %v245 = vrot.slane %v244, 4
    %v246 = vadd.f32 %v244, %v245
    %v247 = vrot.slane %v246, 2
    %v248 = vadd.f32 %v246, %v247
    %v249 = vrot.slane %v248, 1
    %v250 = vadd.f32 %v248, %v249
    %v251 = vlog2.pop %v250
    %v252 = vmul.f32 %v251, 0.6931472
    %v253 = vadd.f32 %v240, %v252
    %v254 = vsub.f32 %v230, %v253
    %255 = vst.msk [vmem:[#allocation8] sm:$0x3] %vm233, %v254
    %s256 = scalar_lea.vmem %s0, 2
    %v257 = vld [vmem:[%s256] sm:$0x3]
    %258 = vmatprep.subr.mxu0 0.0
    %259 = vmatpush1.msra.mxu0 %v29
    %260 = vmatprep.subr.mxu0 0.0
    %261 = vmatpush1.msra.mxu0 %v30
    %262 = vmatprep.subr.mxu0 0.0
    %263 = vmatpush1.msra.mxu0 %v31
    %264 = vmatprep.subr.mxu0 0.0
    %265 = vmatpush1.msra.mxu0 %v32
    %266 = vmatprep.subr.mxu0 0.0
    %267 = vmatpush1.msra.mxu0 0.0
    %268 = vmatprep.subr.mxu0 0.0
    %269 = vmatpush1.msra.mxu0 0.0
    %270 = vmatprep.subr.mxu0 0.0
    %271 = vmatpush1.msra.mxu0 0.0
    %272 = vmatprep.subr.mxu0 0.0
    %273 = vmatpush1.msra.mxu0 0.0
    %274 = vmatprep.subr.mxu0 0.0
    %275 = vmatpush1.msra.mxu0 0.0
    %276 = vmatprep.subr.mxu0 0.0
    %277 = vmatpush1.msra.mxu0 0.0
    %278 = vmatprep.subr.mxu0 0.0
    %279 = vmatpush1.msra.mxu0 0.0
    %280 = vmatprep.subr.mxu0 0.0
    %281 = vmatpush1.msra.mxu0 0.0
    %282 = vmatprep.subr.mxu0 0.0
    %283 = vmatpush1.msra.mxu0 0.0
    %284 = vmatprep.subr.mxu0 0.0
    %285 = vmatpush1.msra.mxu0 0.0
    %286 = vmatprep.subr.mxu0 0.0
    %287 = vmatpush1.msra.mxu0 0.0
    %288 = vmatprep.subr.mxu0 0.0
    %289 = vmatpush1.msra.mxu0 0.0
    %290 = vmatprep.subr.mxu0 0.0
    %291 = vmatpush1.msra.mxu0 0.0
    %292 = vmatprep.subr.mxu0 0.0
    %293 = vmatpush1.msra.mxu0 0.0
    %294 = vmatprep.subr.mxu0 0.0
    %295 = vmatpush1.msra.mxu0 0.0
    %296 = vmatprep.subr.mxu0 0.0
    %297 = vmatpush1.msra.mxu0 0.0
    %298 = vmatprep.subr.mxu0 0.0
    %299 = vmatpush1.msra.mxu0 0.0
    %300 = vmatprep.subr.mxu0 0.0
    %301 = vmatpush1.msra.mxu0 0.0
    %302 = vmatprep.subr.mxu0 0.0
    %303 = vmatpush1.msra.mxu0 0.0
    %304 = vmatprep.subr.mxu0 0.0
    %305 = vmatpush1.msra.mxu0 0.0
    %306 = vmatprep.subr.mxu0 0.0
    %307 = vmatpush1.msra.mxu0 0.0
    %308 = vmatprep.subr.mxu0 0.0
    %309 = vmatpush1.msra.mxu0 0.0
    %310 = vmatprep.subr.mxu0 0.0
    %311 = vmatpush1.msra.mxu0 0.0
    %312 = vmatprep.subr.mxu0 0.0
    %313 = vmatpush1.msra.mxu0 0.0
    %314 = vmatprep.subr.mxu0 0.0
    %315 = vmatpush1.msra.mxu0 0.0
    %316 = vmatprep.subr.mxu0 0.0
    %317 = vmatpush1.msra.mxu0 0.0
    %318 = vmatprep.subr.mxu0 0.0
    %319 = vmatpush1.msra.mxu0 0.0
    %320 = vmatprep.subr.mxu0 0.0
    %321 = vmatpush1.msra.mxu0 0.0
    %322 = vmatprep.mubr.f32.mxu0 0.0
    %323 = vmatmul.mubr.f32.gmra.mrb[0].mxu0 %v161
    %v324 = vpop.f32.mrb[0].mxu0
    %v325 = vadd.f32 0.0, %v324
    %v326 = vpop.f32.mrb[0].mxu0
    %327 = vdwg.mxu0
    %v328 = vadd.f32 %v257, %v325
    %v329 = vxor.u32 %v328, 2147483648
    %v330 = vmul.f32 %v329, 1.442695
    %v331 = vpow.pop %v330
    %v332 = vadd.f32 %v331, 1.0
    %v333 = vrcp.pop %v332
    %v334 = vmul.f32 1.0, %v333
    %v335 = vtanh.pop %v328
    %v336 = vmul.f32 %v334, %v137
    %338 = vrot.lane.b32.xlu0 %v335, 64
    %v339 = vpop.permute.xlu0 %338
    %v341 = vmul.f32 %v334, %v339
    %343 = vrot.lane.b32.xlu0 %v341, 32
    %v344 = vpop.permute.xlu0 %343
    %v346 = vadd.f32 %v336, %v344
    %v347 = vtanh.pop %v346
    %349 = vrot.lane.b32.xlu0 %v347, 64
    %v350 = vpop.permute.xlu0 %349
    %v352 = vmul.f32 %v334, %v350
    %354 = vrot.lane.b32.xlu0 %v352, 32
    %v355 = vpop.permute.xlu0 %354
    %s357 = scalar_lea.vmem [#allocation4], 2
    %358 = vst.msk [vmem:[%s357] sm:$0x3] %vm148, %v355
    %360 = vrot.lane.b32.xlu0 %v346, 96
    %v361 = vpop.permute.xlu0 %360
    %s363 = scalar_lea.vmem [#allocation6], 2
    %364 = vst.msk [vmem:[%s363] sm:$0x3] %vm148, %v361
    %v365 = vsel %vm41, %v355, 0
    %367 = vmatprep.subr.mxu0 0.0
    %368 = vmatpush1.msra.mxu0 %v33
    %369 = vmatprep.subr.mxu0 0.0
    %370 = vmatpush1.msra.mxu0 %v34
    %371 = vmatprep.subr.mxu0 0.0
    %372 = vmatpush1.msra.mxu0 %v35
    %373 = vmatprep.subr.mxu0 0.0
    %374 = vmatpush1.msra.mxu0 %v36
    %375 = vmatprep.subr.mxu0 0.0
    %376 = vmatpush1.msra.mxu0 0.0
    %377 = vmatprep.subr.mxu0 0.0
    %378 = vmatpush1.msra.mxu0 0.0
    %379 = vmatprep.subr.mxu0 0.0
    %380 = vmatpush1.msra.mxu0 0.0
    %381 = vmatprep.subr.mxu0 0.0
    %382 = vmatpush1.msra.mxu0 0.0
    %383 = vmatprep.subr.mxu0 0.0
    %384 = vmatpush1.msra.mxu0 0.0
    %385 = vmatprep.subr.mxu0 0.0
    %386 = vmatpush1.msra.mxu0 0.0
    %387 = vmatprep.subr.mxu0 0.0
    %388 = vmatpush1.msra.mxu0 0.0
    %389 = vmatprep.subr.mxu0 0.0
    %390 = vmatpush1.msra.mxu0 0.0
    %391 = vmatprep.subr.mxu0 0.0
    %392 = vmatpush1.msra.mxu0 0.0
    %393 = vmatprep.subr.mxu0 0.0
    %394 = vmatpush1.msra.mxu0 0.0
    %395 = vmatprep.subr.mxu0 0.0
    %396 = vmatpush1.msra.mxu0 0.0
    %397 = vmatprep.subr.mxu0 0.0
    %398 = vmatpush1.msra.mxu0 0.0
    %399 = vmatprep.subr.mxu0 0.0
    %400 = vmatpush1.msra.mxu0 0.0
    %401 = vmatprep.subr.mxu0 0.0
    %402 = vmatpush1.msra.mxu0 0.0
    %403 = vmatprep.subr.mxu0 0.0
    %404 = vmatpush1.msra.mxu0 0.0
    %405 = vmatprep.subr.mxu0 0.0
    %406 = vmatpush1.msra.mxu0 0.0
    %407 = vmatprep.subr.mxu0 0.0
    %408 = vmatpush1.msra.mxu0 0.0
    %409 = vmatprep.subr.mxu0 0.0
    %410 = vmatpush1.msra.mxu0 0.0
    %411 = vmatprep.subr.mxu0 0.0
    %412 = vmatpush1.msra.mxu0 0.0
    %413 = vmatprep.subr.mxu0 0.0
    %414 = vmatpush1.msra.mxu0 0.0
    %415 = vmatprep.subr.mxu0 0.0
    %416 = vmatpush1.msra.mxu0 0.0
    %417 = vmatprep.subr.mxu0 0.0
    %418 = vmatpush1.msra.mxu0 0.0
    %419 = vmatprep.subr.mxu0 0.0
    %420 = vmatpush1.msra.mxu0 0.0
    %421 = vmatprep.subr.mxu0 0.0
    %422 = vmatpush1.msra.mxu0 0.0
    %423 = vmatprep.subr.mxu0 0.0
    %424 = vmatpush1.msra.mxu0 0.0
    %425 = vmatprep.subr.mxu0 0.0
    %426 = vmatpush1.msra.mxu0 0.0
    %427 = vmatprep.subr.mxu0 0.0
    %428 = vmatpush1.msra.mxu0 0.0
    %429 = vmatprep.subr.mxu0 0.0
    %430 = vmatpush1.msra.mxu0 0.0
    %431 = vmatprep.mubr.f32.mxu0 0.0
    %432 = vmatmul.mubr.f32.gmra.mrb[0].mxu0 %v365
    %v433 = vpop.f32.mrb[0].mxu0
    %v434 = vadd.f32 %v159, %v433
    %v435 = vpop.f32.mrb[0].mxu0
    %436 = vdwg.mxu0
    %v437 = vsel %vm233, %v434, -inf
    %v438 = vrot.slane %v437, 4
    %v439 = vmax.f32 %v437, %v438
    %v440 = vrot.slane %v439, 2
    %v441 = vmax.f32 %v439, %v440
    %v442 = vrot.slane %v441, 1
    %v443 = vmax.f32 %v441, %v442
    %v444 = vsub.f32 %v434, %v443
    %v445 = vmul.f32 %v444, 1.442695
    %v446 = vpow.pop %v445
    %v447 = vsel %vm233, %v446, 0.0
    %v448 = vrot.slane %v447, 4
    %v449 = vadd.f32 %v447, %v448
    %v450 = vrot.slane %v449, 2
    %v451 = vadd.f32 %v449, %v450
    %v452 = vrot.slane %v451, 1
    %v453 = vadd.f32 %v451, %v452
    %v454 = vlog2.pop %v453
    %v455 = vmul.f32 %v454, 0.6931472
    %v456 = vadd.f32 %v443, %v455
    %v457 = vsub.f32 %v434, %v456
    %s458 = scalar_lea.vmem [#allocation8], 2
    %459 = vst.msk [vmem:[%s458] sm:$0x3] %vm233, %v457
    %s460 = scalar_lea.vmem %s0, 4
    %v461 = vld [vmem:[%s460] sm:$0x3]
    %462 = vmatprep.subr.mxu0 0.0
    %463 = vmatpush1.msra.mxu0 %v29
    %464 = vmatprep.subr.mxu0 0.0
    %465 = vmatpush1.msra.mxu0 %v30
    %466 = vmatprep.subr.mxu0 0.0
    %467 = vmatpush1.msra.mxu0 %v31
    %468 = vmatprep.subr.mxu0 0.0
    %469 = vmatpush1.msra.mxu0 %v32
    %470 = vmatprep.subr.mxu0 0.0
    %471 = vmatpush1.msra.mxu0 0.0
    %472 = vmatprep.subr.mxu0 0.0
    %473 = vmatpush1.msra.mxu0 0.0
    %474 = vmatprep.subr.mxu0 0.0
    %475 = vmatpush1.msra.mxu0 0.0
    %476 = vmatprep.subr.mxu0 0.0
    %477 = vmatpush1.msra.mxu0 0.0
    %478 = vmatprep.subr.mxu0 0.0
    %479 = vmatpush1.msra.mxu0 0.0
    %480 = vmatprep.subr.mxu0 0.0
    %481 = vmatpush1.msra.mxu0 0.0
    %482 = vmatprep.subr.mxu0 0.0
    %483 = vmatpush1.msra.mxu0 0.0
    %484 = vmatprep.subr.mxu0 0.0
    %485 = vmatpush1.msra.mxu0 0.0
    %486 = vmatprep.subr.mxu0 0.0
    %487 = vmatpush1.msra.mxu0 0.0
    %488 = vmatprep.subr.mxu0 0.0
    %489 = vmatpush1.msra.mxu0 0.0
    %490 = vmatprep.subr.mxu0 0.0
    %491 = vmatpush1.msra.mxu0 0.0
    %492 = vmatprep.subr.mxu0 0.0
    %493 = vmatpush1.msra.mxu0 0.0
    %494 = vmatprep.subr.mxu0 0.0
    %495 = vmatpush1.msra.mxu0 0.0
    %496 = vmatprep.subr.mxu0 0.0
    %497 = vmatpush1.msra.mxu0 0.0
    %498 = vmatprep.subr.mxu0 0.0
    %499 = vmatpush1.msra.mxu0 0.0
    %500 = vmatprep.subr.mxu0 0.0
    %501 = vmatpush1.msra.mxu0 0.0
    %502 = vmatprep.subr.mxu0 0.0
    %503 = vmatpush1.msra.mxu0 0.0
    %504 = vmatprep.subr.mxu0 0.0
    %505 = vmatpush1.msra.mxu0 0.0
    %506 = vmatprep.subr.mxu0 0.0
    %507 = vmatpush1.msra.mxu0 0.0
    %508 = vmatprep.subr.mxu0 0.0
    %509 = vmatpush1.msra.mxu0 0.0
    %510 = vmatprep.subr.mxu0 0.0
    %511 = vmatpush1.msra.mxu0 0.0
    %512 = vmatprep.subr.mxu0 0.0
    %513 = vmatpush1.msra.mxu0 0.0
    %514 = vmatprep.subr.mxu0 0.0
    %515 = vmatpush1.msra.mxu0 0.0
    %516 = vmatprep.subr.mxu0 0.0
    %517 = vmatpush1.msra.mxu0 0.0
    %518 = vmatprep.subr.mxu0 0.0
    %519 = vmatpush1.msra.mxu0 0.0
    %520 = vmatprep.subr.mxu0 0.0
    %521 = vmatpush1.msra.mxu0 0.0
    %522 = vmatprep.subr.mxu0 0.0
    %523 = vmatpush1.msra.mxu0 0.0
    %524 = vmatprep.subr.mxu0 0.0
    %525 = vmatpush1.msra.mxu0 0.0
    %526 = vmatprep.mubr.f32.mxu0 0.0
    %527 = vmatmul.mubr.f32.gmra.mrb[0].mxu0 %v365
    %v528 = vpop.f32.mrb[0].mxu0
    %v529 = vadd.f32 0.0, %v528
    %v530 = vpop.f32.mrb[0].mxu0
    %531 = vdwg.mxu0
    %v532 = vadd.f32 %v461, %v529
    %v533 = vxor.u32 %v532, 2147483648
    %v534 = vmul.f32 %v533, 1.442695
    %v535 = vpow.pop %v534
    %v536 = vadd.f32 %v535, 1.0
    %v537 = vrcp.pop %v536
    %v538 = vmul.f32 1.0, %v537
    %v539 = vtanh.pop %v532
    %v540 = vmul.f32 %v538, %v346
    %542 = vrot.lane.b32.xlu0 %v539, 64
    %v543 = vpop.permute.xlu0 %542
    %v545 = vmul.f32 %v538, %v543
    %547 = vrot.lane.b32.xlu0 %v545, 32
    %v548 = vpop.permute.xlu0 %547
    %v550 = vadd.f32 %v540, %v548
    %v551 = vtanh.pop %v550
    %553 = vrot.lane.b32.xlu0 %v551, 64
    %v554 = vpop.permute.xlu0 %553
    %v556 = vmul.f32 %v538, %v554
    %558 = vrot.lane.b32.xlu0 %v556, 32
    %v559 = vpop.permute.xlu0 %558
    %s561 = scalar_lea.vmem [#allocation4], 4
    %562 = vst.msk [vmem:[%s561] sm:$0x3] %vm148, %v559
    %564 = vrot.lane.b32.xlu0 %v550, 96
    %v565 = vpop.permute.xlu0 %564
    %s567 = scalar_lea.vmem [#allocation6], 4
    %568 = vst.msk [vmem:[%s567] sm:$0x3] %vm148, %v565
    %v569 = vsel %vm41, %v559, 0
    %571 = vmatprep.subr.mxu0 0.0
    %572 = vmatpush1.msra.mxu0 %v33
    %573 = vmatprep.subr.mxu0 0.0
    %574 = vmatpush1.msra.mxu0 %v34
    %575 = vmatprep.subr.mxu0 0.0
    %576 = vmatpush1.msra.mxu0 %v35
    %577 = vmatprep.subr.mxu0 0.0
    %578 = vmatpush1.msra.mxu0 %v36
    %579 = vmatprep.subr.mxu0 0.0
    %580 = vmatpush1.msra.mxu0 0.0
    %581 = vmatprep.subr.mxu0 0.0
    %582 = vmatpush1.msra.mxu0 0.0
    %583 = vmatprep.subr.mxu0 0.0
    %584 = vmatpush1.msra.mxu0 0.0
    %585 = vmatprep.subr.mxu0 0.0
    %586 = vmatpush1.msra.mxu0 0.0
    %587 = vmatprep.subr.mxu0 0.0
    %588 = vmatpush1.msra.mxu0 0.0
    %589 = vmatprep.subr.mxu0 0.0
    %590 = vmatpush1.msra.mxu0 0.0
    %591 = vmatprep.subr.mxu0 0.0
    %592 = vmatpush1.msra.mxu0 0.0
    %593 = vmatprep.subr.mxu0 0.0
    %594 = vmatpush1.msra.mxu0 0.0
    %595 = vmatprep.subr.mxu0 0.0
    %596 = vmatpush1.msra.mxu0 0.0
    %597 = vmatprep.subr.mxu0 0.0
    %598 = vmatpush1.msra.mxu0 0.0
    %599 = vmatprep.subr.mxu0 0.0
    %600 = vmatpush1.msra.mxu0 0.0
    %601 = vmatprep.subr.mxu0 0.0
    %602 = vmatpush1.msra.mxu0 0.0
    %603 = vmatprep.subr.mxu0 0.0
    %604 = vmatpush1.msra.mxu0 0.0
    %605 = vmatprep.subr.mxu0 0.0
    %606 = vmatpush1.msra.mxu0 0.0
    %607 = vmatprep.subr.mxu0 0.0
    %608 = vmatpush1.msra.mxu0 0.0
    %609 = vmatprep.subr.mxu0 0.0
    %610 = vmatpush1.msra.mxu0 0.0
    %611 = vmatprep.subr.mxu0 0.0
    %612 = vmatpush1.msra.mxu0 0.0
    %613 = vmatprep.subr.mxu0 0.0
    %614 = vmatpush1.msra.mxu0 0.0
    %615 = vmatprep.subr.mxu0 0.0
    %616 = vmatpush1.msra.mxu0 0.0
    %617 = vmatprep.subr.mxu0 0.0
    %618 = vmatpush1.msra.mxu0 0.0
    %619 = vmatprep.subr.mxu0 0.0
    %620 = vmatpush1.msra.mxu0 0.0
    %621 = vmatprep.subr.mxu0 0.0
    %622 = vmatpush1.msra.mxu0 0.0
    %623 = vmatprep.subr.mxu0 0.0
    %624 = vmatpush1.msra.mxu0 0.0
    %625 = vmatprep.subr.mxu0 0.0
    %626 = vmatpush1.msra.mxu0 0.0
    %627 = vmatprep.subr.mxu0 0.0
    %628 = vmatpush1.msra.mxu0 0.0
    %629 = vmatprep.subr.mxu0 0.0
    %630 = vmatpush1.msra.mxu0 0.0
    %631 = vmatprep.subr.mxu0 0.0
    %632 = vmatpush1.msra.mxu0 0.0
    %633 = vmatprep.subr.mxu0 0.0
    %634 = vmatpush1.msra.mxu0 0.0
    %635 = vmatprep.mubr.f32.mxu0 0.0
    %636 = vmatmul.mubr.f32.gmra.mrb[0].mxu0 %v569
    %v637 = vpop.f32.mrb[0].mxu0
    %v638 = vadd.f32 %v159, %v637
    %v639 = vpop.f32.mrb[0].mxu0
    %640 = vdwg.mxu0
    %v641 = vsel %vm233, %v638, -inf
    %v642 = vrot.slane %v641, 4
    %v643 = vmax.f32 %v641, %v642
    %v644 = vrot.slane %v643, 2
    %v645 = vmax.f32 %v643, %v644
    %v646 = vrot.slane %v645, 1
    %v647 = vmax.f32 %v645, %v646
    %v648 = vsub.f32 %v638, %v647
    %v649 = vmul.f32 %v648, 1.442695
    %v650 = vpow.pop %v649
    %v651 = vsel %vm233, %v650, 0.0
    %v652 = vrot.slane %v651, 4
    %v653 = vadd.f32 %v651, %v652
    %v654 = vrot.slane %v653, 2
    %v655 = vadd.f32 %v653, %v654
    %v656 = vrot.slane %v655, 1
    %v657 = vadd.f32 %v655, %v656
    %v658 = vlog2.pop %v657
    %v659 = vmul.f32 %v658, 0.6931472
    %v660 = vadd.f32 %v647, %v659
    %v661 = vsub.f32 %v638, %v660
    %s662 = scalar_lea.vmem [#allocation8], 4
    %663 = vst.msk [vmem:[%s662] sm:$0x3] %vm233, %v661
    %s664 = scalar_lea.vmem %s0, 6
    %v665 = vld [vmem:[%s664] sm:$0x3]
    %666 = vmatprep.subr.mxu0 0.0
    %667 = vmatpush1.msra.mxu0 %v29
    %668 = vmatprep.subr.mxu0 0.0
    %669 = vmatpush1.msra.mxu0 %v30
    %670 = vmatprep.subr.mxu0 0.0
    %671 = vmatpush1.msra.mxu0 %v31
    %672 = vmatprep.subr.mxu0 0.0
    %673 = vmatpush1.msra.mxu0 %v32
    %674 = vmatprep.subr.mxu0 0.0
    %675 = vmatpush1.msra.mxu0 0.0
    %676 = vmatprep.subr.mxu0 0.0
    %677 = vmatpush1.msra.mxu0 0.0
    %678 = vmatprep.subr.mxu0 0.0
    %679 = vmatpush1.msra.mxu0 0.0
    %680 = vmatprep.subr.mxu0 0.0
    %681 = vmatpush1.msra.mxu0 0.0
    %682 = vmatprep.subr.mxu0 0.0
    %683 = vmatpush1.msra.mxu0 0.0
    %684 = vmatprep.subr.mxu0 0.0
    %685 = vmatpush1.msra.mxu0 0.0
    %686 = vmatprep.subr.mxu0 0.0
    %687 = vmatpush1.msra.mxu0 0.0
    %688 = vmatprep.subr.mxu0 0.0
    %689 = vmatpush1.msra.mxu0 0.0
    %690 = vmatprep.subr.mxu0 0.0
    %691 = vmatpush1.msra.mxu0 0.0
    %692 = vmatprep.subr.mxu0 0.0
    %693 = vmatpush1.msra.mxu0 0.0
    %694 = vmatprep.subr.mxu0 0.0
    %695 = vmatpush1.msra.mxu0 0.0
    %696 = vmatprep.subr.mxu0 0.0
    %697 = vmatpush1.msra.mxu0 0.0
    %698 = vmatprep.subr.mxu0 0.0
    %699 = vmatpush1.msra.mxu0 0.0
    %700 = vmatprep.subr.mxu0 0.0
    %701 = vmatpush1.msra.mxu0 0.0
    %702 = vmatprep.subr.mxu0 0.0
    %703 = vmatpush1.msra.mxu0 0.0
    %704 = vmatprep.subr.mxu0 0.0
    %705 = vmatpush1.msra.mxu0 0.0
    %706 = vmatprep.subr.mxu0 0.0
    %707 = vmatpush1.msra.mxu0 0.0
    %708 = vmatprep.subr.mxu0 0.0
    %709 = vmatpush1.msra.mxu0 0.0
    %710 = vmatprep.subr.mxu0 0.0
    %711 = vmatpush1.msra.mxu0 0.0
    %712 = vmatprep.subr.mxu0 0.0
    %713 = vmatpush1.msra.mxu0 0.0
    %714 = vmatprep.subr.mxu0 0.0
    %715 = vmatpush1.msra.mxu0 0.0
    %716 = vmatprep.subr.mxu0 0.0
    %717 = vmatpush1.msra.mxu0 0.0
    %718 = vmatprep.subr.mxu0 0.0
    %719 = vmatpush1.msra.mxu0 0.0
    %720 = vmatprep.subr.mxu0 0.0
    %721 = vmatpush1.msra.mxu0 0.0
    %722 = vmatprep.subr.mxu0 0.0
    %723 = vmatpush1.msra.mxu0 0.0
    %724 = vmatprep.subr.mxu0 0.0
    %725 = vmatpush1.msra.mxu0 0.0
    %726 = vmatprep.subr.mxu0 0.0
    %727 = vmatpush1.msra.mxu0 0.0
    %728 = vmatprep.subr.mxu0 0.0
    %729 = vmatpush1.msra.mxu0 0.0
    %730 = vmatprep.mubr.f32.mxu0 0.0
    %731 = vmatmul.mubr.f32.gmra.mrb[0].mxu0 %v569
    %v732 = vpop.f32.mrb[0].mxu0
    %v733 = vadd.f32 0.0, %v732
    %v734 = vpop.f32.mrb[0].mxu0
    %735 = vdwg.mxu0
    %v736 = vadd.f32 %v665, %v733
    %v737 = vxor.u32 %v736, 2147483648
    %v738 = vmul.f32 %v737, 1.442695
    %v739 = vpow.pop %v738
    %v740 = vadd.f32 %v739, 1.0
    %v741 = vrcp.pop %v740
    %v742 = vmul.f32 1.0, %v741
    %v743 = vtanh.pop %v736
    %v744 = vmul.f32 %v742, %v550
    %746 = vrot.lane.b32.xlu0 %v743, 64
    %v747 = vpop.permute.xlu0 %746
    %v749 = vmul.f32 %v742, %v747
    %751 = vrot.lane.b32.xlu0 %v749, 32
    %v752 = vpop.permute.xlu0 %751
    %v754 = vadd.f32 %v744, %v752
    %v755 = vtanh.pop %v754
    %757 = vrot.lane.b32.xlu0 %v755, 64
    %v758 = vpop.permute.xlu0 %757
    %v760 = vmul.f32 %v742, %v758
    %762 = vrot.lane.b32.xlu0 %v760, 32
    %v763 = vpop.permute.xlu0 %762
    %s765 = scalar_lea.vmem [#allocation4], 6
    %766 = vst.msk [vmem:[%s765] sm:$0x3] %vm148, %v763
    %768 = vrot.lane.b32.xlu0 %v754, 96
    %v769 = vpop.permute.xlu0 %768
    %s771 = scalar_lea.vmem [#allocation6], 6
    %772 = vst.msk [vmem:[%s771] sm:$0x3] %vm148, %v769
    %v773 = vsel %vm41, %v763, 0
    %775 = vmatprep.subr.mxu0 0.0
    %776 = vmatpush1.msra.mxu0 %v33
    %777 = vmatprep.subr.mxu0 0.0
    %778 = vmatpush1.msra.mxu0 %v34
    %779 = vmatprep.subr.mxu0 0.0
    %780 = vmatpush1.msra.mxu0 %v35
    %781 = vmatprep.subr.mxu0 0.0
    %782 = vmatpush1.msra.mxu0 %v36
    %783 = vmatprep.subr.mxu0 0.0
    %784 = vmatpush1.msra.mxu0 0.0
    %785 = vmatprep.subr.mxu0 0.0
    %786 = vmatpush1.msra.mxu0 0.0
    %787 = vmatprep.subr.mxu0 0.0
    %788 = vmatpush1.msra.mxu0 0.0
    %789 = vmatprep.subr.mxu0 0.0
    %790 = vmatpush1.msra.mxu0 0.0
    %791 = vmatprep.subr.mxu0 0.0
    %792 = vmatpush1.msra.mxu0 0.0
    %793 = vmatprep.subr.mxu0 0.0
    %794 = vmatpush1.msra.mxu0 0.0
    %795 = vmatprep.subr.mxu0 0.0
    %796 = vmatpush1.msra.mxu0 0.0
    %797 = vmatprep.subr.mxu0 0.0
    %798 = vmatpush1.msra.mxu0 0.0
    %799 = vmatprep.subr.mxu0 0.0
    %800 = vmatpush1.msra.mxu0 0.0
    %801 = vmatprep.subr.mxu0 0.0
    %802 = vmatpush1.msra.mxu0 0.0
    %803 = vmatprep.subr.mxu0 0.0
    %804 = vmatpush1.msra.mxu0 0.0
    %805 = vmatprep.subr.mxu0 0.0
    %806 = vmatpush1.msra.mxu0 0.0
    %807 = vmatprep.subr.mxu0 0.0
    %808 = vmatpush1.msra.mxu0 0.0
    %809 = vmatprep.subr.mxu0 0.0
    %810 = vmatpush1.msra.mxu0 0.0
    %811 = vmatprep.subr.mxu0 0.0
    %812 = vmatpush1.msra.mxu0 0.0
    %813 = vmatprep.subr.mxu0 0.0
    %814 = vmatpush1.msra.mxu0 0.0
    %815 = vmatprep.subr.mxu0 0.0
    %816 = vmatpush1.msra.mxu0 0.0
    %817 = vmatprep.subr.mxu0 0.0
    %818 = vmatpush1.msra.mxu0 0.0
    %819 = vmatprep.subr.mxu0 0.0
    %820 = vmatpush1.msra.mxu0 0.0
    %821 = vmatprep.subr.mxu0 0.0
    %822 = vmatpush1.msra.mxu0 0.0
    %823 = vmatprep.subr.mxu0 0.0
    %824 = vmatpush1.msra.mxu0 0.0
    %825 = vmatprep.subr.mxu0 0.0
    %826 = vmatpush1.msra.mxu0 0.0
    %827 = vmatprep.subr.mxu0 0.0
    %828 = vmatpush1.msra.mxu0 0.0
    %829 = vmatprep.subr.mxu0 0.0
    %830 = vmatpush1.msra.mxu0 0.0
    %831 = vmatprep.subr.mxu0 0.0
    %832 = vmatpush1.msra.mxu0 0.0
    %833 = vmatprep.subr.mxu0 0.0
    %834 = vmatpush1.msra.mxu0 0.0
    %835 = vmatprep.subr.mxu0 0.0
    %836 = vmatpush1.msra.mxu0 0.0
    %837 = vmatprep.subr.mxu0 0.0
    %838 = vmatpush1.msra.mxu0 0.0
    %839 = vmatprep.mubr.f32.mxu0 0.0
    %840 = vmatmul.mubr.f32.gmra.mrb[0].mxu0 %v773
    %v841 = vpop.f32.mrb[0].mxu0
    %v842 = vadd.f32 %v159, %v841
    %v843 = vpop.f32.mrb[0].mxu0
    %844 = vdwg.mxu0
    %v845 = vsel %vm233, %v842, -inf
    %v846 = vrot.slane %v845, 4
    %v847 = vmax.f32 %v845, %v846
    %v848 = vrot.slane %v847, 2
    %v849 = vmax.f32 %v847, %v848
    %v850 = vrot.slane %v849, 1
    %v851 = vmax.f32 %v849, %v850
    %v852 = vsub.f32 %v842, %v851
    %v853 = vmul.f32 %v852, 1.442695
    %v854 = vpow.pop %v853
    %v855 = vsel %vm233, %v854, 0.0
    %v856 = vrot.slane %v855, 4
    %v857 = vadd.f32 %v855, %v856
    %v858 = vrot.slane %v857, 2
    %v859 = vadd.f32 %v857, %v858
    %v860 = vrot.slane %v859, 1
    %v861 = vadd.f32 %v859, %v860
    %v862 = vlog2.pop %v861
    %v863 = vmul.f32 %v862, 0.6931472
    %v864 = vadd.f32 %v851, %v863
    %v865 = vsub.f32 %v842, %v864
    %s866 = scalar_lea.vmem [#allocation8], 6
    %867 = vst.msk [vmem:[%s866] sm:$0x3] %vm233, %v865
    %s868 = scalar_lea.vmem %s0, 8
    %v869 = vld [vmem:[%s868] sm:$0x3]
    %870 = vmatprep.subr.mxu0 0.0
    %871 = vmatpush1.msra.mxu0 %v29
    %872 = vmatprep.subr.mxu0 0.0
    %873 = vmatpush1.msra.mxu0 %v30
    %874 = vmatprep.subr.mxu0 0.0
    %875 = vmatpush1.msra.mxu0 %v31
    %876 = vmatprep.subr.mxu0 0.0
    %877 = vmatpush1.msra.mxu0 %v32
    %878 = vmatprep.subr.mxu0 0.0
    %879 = vmatpush1.msra.mxu0 0.0
    %880 = vmatprep.subr.mxu0 0.0
    %881 = vmatpush1.msra.mxu0 0.0
    %882 = vmatprep.subr.mxu0 0.0
    %883 = vmatpush1.msra.mxu0 0.0
    %884 = vmatprep.subr.mxu0 0.0
    %885 = vmatpush1.msra.mxu0 0.0
    %886 = vmatprep.subr.mxu0 0.0
    %887 = vmatpush1.msra.mxu0 0.0
    %888 = vmatprep.subr.mxu0 0.0
    %889 = vmatpush1.msra.mxu0 0.0
    %890 = vmatprep.subr.mxu0 0.0
    %891 = vmatpush1.msra.mxu0 0.0
    %892 = vmatprep.subr.mxu0 0.0
    %893 = vmatpush1.msra.mxu0 0.0
    %894 = vmatprep.subr.mxu0 0.0
    %895 = vmatpush1.msra.mxu0 0.0
    %896 = vmatprep.subr.mxu0 0.0
    %897 = vmatpush1.msra.mxu0 0.0
    %898 = vmatprep.subr.mxu0 0.0
    %899 = vmatpush1.msra.mxu0 0.0
    %900 = vmatprep.subr.mxu0 0.0
    %901 = vmatpush1.msra.mxu0 0.0
    %902 = vmatprep.subr.mxu0 0.0
    %903 = vmatpush1.msra.mxu0 0.0
    %904 = vmatprep.subr.mxu0 0.0
    %905 = vmatpush1.msra.mxu0 0.0
    %906 = vmatprep.subr.mxu0 0.0
    %907 = vmatpush1.msra.mxu0 0.0
    %908 = vmatprep.subr.mxu0 0.0
    %909 = vmatpush1.msra.mxu0 0.0
    %910 = vmatprep.subr.mxu0 0.0
    %911 = vmatpush1.msra.mxu0 0.0
    %912 = vmatprep.subr.mxu0 0.0
    %913 = vmatpush1.msra.mxu0 0.0
    %914 = vmatprep.subr.mxu0 0.0
    %915 = vmatpush1.msra.mxu0 0.0
    %916 = vmatprep.subr.mxu0 0.0
    %917 = vmatpush1.msra.mxu0 0.0
    %918 = vmatprep.subr.mxu0 0.0
    %919 = vmatpush1.msra.mxu0 0.0
    %920 = vmatprep.subr.mxu0 0.0
    %921 = vmatpush1.msra.mxu0 0.0
    %922 = vmatprep.subr.mxu0 0.0
    %923 = vmatpush1.msra.mxu0 0.0
    %924 = vmatprep.subr.mxu0 0.0
    %925 = vmatpush1.msra.mxu0 0.0
    %926 = vmatprep.subr.mxu0 0.0
    %927 = vmatpush1.msra.mxu0 0.0
    %928 = vmatprep.subr.mxu0 0.0
    %929 = vmatpush1.msra.mxu0 0.0
    %930 = vmatprep.subr.mxu0 0.0
    %931 = vmatpush1.msra.mxu0 0.0
    %932 = vmatprep.subr.mxu0 0.0
    %933 = vmatpush1.msra.mxu0 0.0
    %934 = vmatprep.mubr.f32.mxu0 0.0
    %935 = vmatmul.mubr.f32.gmra.mrb[0].mxu0 %v773
    %v936 = vpop.f32.mrb[0].mxu0
    %v937 = vadd.f32 0.0, %v936
    %v938 = vpop.f32.mrb[0].mxu0
    %939 = vdwg.mxu0
    %v940 = vadd.f32 %v869, %v937
    %v941 = vxor.u32 %v940, 2147483648
    %v942 = vmul.f32 %v941, 1.442695
    %v943 = vpow.pop %v942
    %v944 = vadd.f32 %v943, 1.0
    %v945 = vrcp.pop %v944
    %v946 = vmul.f32 1.0, %v945
    %v947 = vtanh.pop %v940
    %v948 = vmul.f32 %v946, %v754
    %950 = vrot.lane.b32.xlu0 %v947, 64
    %v951 = vpop.permute.xlu0 %950
    %v953 = vmul.f32 %v946, %v951
    %955 = vrot.lane.b32.xlu0 %v953, 32
    %v956 = vpop.permute.xlu0 %955
    %v958 = vadd.f32 %v948, %v956
    %v959 = vtanh.pop %v958
    %961 = vrot.lane.b32.xlu0 %v959, 64
    %v962 = vpop.permute.xlu0 %961
    %v964 = vmul.f32 %v946, %v962
    %966 = vrot.lane.b32.xlu0 %v964, 32
    %v967 = vpop.permute.xlu0 %966
    %s969 = scalar_lea.vmem [#allocation4], 8
    %970 = vst.msk [vmem:[%s969] sm:$0x3] %vm148, %v967
    %972 = vrot.lane.b32.xlu0 %v958, 96
    %v973 = vpop.permute.xlu0 %972
    %s975 = scalar_lea.vmem [#allocation6], 8
    %976 = vst.msk [vmem:[%s975] sm:$0x3] %vm148, %v973
    %v977 = vsel %vm41, %v967, 0
    %979 = vmatprep.subr.mxu0 0.0
    %980 = vmatpush1.msra.mxu0 %v33
    %981 = vmatprep.subr.mxu0 0.0
    %982 = vmatpush1.msra.mxu0 %v34
    %983 = vmatprep.subr.mxu0 0.0
    %984 = vmatpush1.msra.mxu0 %v35
    %985 = vmatprep.subr.mxu0 0.0
    %986 = vmatpush1.msra.mxu0 %v36
    %987 = vmatprep.subr.mxu0 0.0
    %988 = vmatpush1.msra.mxu0 0.0
    %989 = vmatprep.subr.mxu0 0.0
    %990 = vmatpush1.msra.mxu0 0.0
    %991 = vmatprep.subr.mxu0 0.0
    %992 = vmatpush1.msra.mxu0 0.0
    %993 = vmatprep.subr.mxu0 0.0
    %994 = vmatpush1.msra.mxu0 0.0
    %995 = vmatprep.subr.mxu0 0.0
    %996 = vmatpush1.msra.mxu0 0.0
    %997 = vmatprep.subr.mxu0 0.0
    %998 = vmatpush1.msra.mxu0 0.0
    %999 = vmatprep.subr.mxu0 0.0
    %1000 = vmatpush1.msra.mxu0 0.0
    %1001 = vmatprep.subr.mxu0 0.0
    %1002 = vmatpush1.msra.mxu0 0.0
    %1003 = vmatprep.subr.mxu0 0.0
    %1004 = vmatpush1.msra.mxu0 0.0
    %1005 = vmatprep.subr.mxu0 0.0
    %1006 = vmatpush1.msra.mxu0 0.0
    %1007 = vmatprep.subr.mxu0 0.0
    %1008 = vmatpush1.msra.mxu0 0.0
    %1009 = vmatprep.subr.mxu0 0.0
    %1010 = vmatpush1.msra.mxu0 0.0
    %1011 = vmatprep.subr.mxu0 0.0
    %1012 = vmatpush1.msra.mxu0 0.0
    %1013 = vmatprep.subr.mxu0 0.0
    %1014 = vmatpush1.msra.mxu0 0.0
    %1015 = vmatprep.subr.mxu0 0.0
    %1016 = vmatpush1.msra.mxu0 0.0
    %1017 = vmatprep.subr.mxu0 0.0
    %1018 = vmatpush1.msra.mxu0 0.0
    %1019 = vmatprep.subr.mxu0 0.0
    %1020 = vmatpush1.msra.mxu0 0.0
    %1021 = vmatprep.subr.mxu0 0.0
    %1022 = vmatpush1.msra.mxu0 0.0
    %1023 = vmatprep.subr.mxu0 0.0
    %1024 = vmatpush1.msra.mxu0 0.0
    %1025 = vmatprep.subr.mxu0 0.0
    %1026 = vmatpush1.msra.mxu0 0.0
    %1027 = vmatprep.subr.mxu0 0.0
    %1028 = vmatpush1.msra.mxu0 0.0
    %1029 = vmatprep.subr.mxu0 0.0
    %1030 = vmatpush1.msra.mxu0 0.0
    %1031 = vmatprep.subr.mxu0 0.0
    %1032 = vmatpush1.msra.mxu0 0.0
    %1033 = vmatprep.subr.mxu0 0.0
    %1034 = vmatpush1.msra.mxu0 0.0
    %1035 = vmatprep.subr.mxu0 0.0
    %1036 = vmatpush1.msra.mxu0 0.0
    %1037 = vmatprep.subr.mxu0 0.0
    %1038 = vmatpush1.msra.mxu0 0.0
    %1039 = vmatprep.subr.mxu0 0.0
    %1040 = vmatpush1.msra.mxu0 0.0
    %1041 = vmatprep.subr.mxu0 0.0
    %1042 = vmatpush1.msra.mxu0 0.0
    %1043 = vmatprep.mubr.f32.mxu0 0.0
    %1044 = vmatmul.mubr.f32.gmra.mrb[0].mxu0 %v977
    %v1045 = vpop.f32.mrb[0].mxu0
    %v1046 = vadd.f32 %v159, %v1045
    %v1047 = vpop.f32.mrb[0].mxu0
    %1048 = vdwg.mxu0
    %v1049 = vsel %vm233, %v1046, -inf
    %v1050 = vrot.slane %v1049, 4
    %v1051 = vmax.f32 %v1049, %v1050
    %v1052 = vrot.slane %v1051, 2
    %v1053 = vmax.f32 %v1051, %v1052
    %v1054 = vrot.slane %v1053, 1
    %v1055 = vmax.f32 %v1053, %v1054
    %v1056 = vsub.f32 %v1046, %v1055
    %v1057 = vmul.f32 %v1056, 1.442695
    %v1058 = vpow.pop %v1057
    %v1059 = vsel %vm233, %v1058, 0.0
    %v1060 = vrot.slane %v1059, 4
    %v1061 = vadd.f32 %v1059, %v1060
    %v1062 = vrot.slane %v1061, 2
    %v1063 = vadd.f32 %v1061, %v1062
    %v1064 = vrot.slane %v1063, 1
    %v1065 = vadd.f32 %v1063, %v1064
    %v1066 = vlog2.pop %v1065
    %v1067 = vmul.f32 %v1066, 0.6931472
    %v1068 = vadd.f32 %v1055, %v1067
    %v1069 = vsub.f32 %v1046, %v1068
    %s1070 = scalar_lea.vmem [#allocation8], 8
    %1071 = vst.msk [vmem:[%s1070] sm:$0x3] %vm233, %v1069
    %s1072 = scalar_lea.vmem %s0, 10
    %v1073 = vld [vmem:[%s1072] sm:$0x3]
    %1074 = vmatprep.subr.mxu0 0.0
    %1075 = vmatpush1.msra.mxu0 %v29
    %1076 = vmatprep.subr.mxu0 0.0
    %1077 = vmatpush1.msra.mxu0 %v30
    %1078 = vmatprep.subr.mxu0 0.0
    %1079 = vmatpush1.msra.mxu0 %v31
    %1080 = vmatprep.subr.mxu0 0.0
    %1081 = vmatpush1.msra.mxu0 %v32
    %1082 = vmatprep.subr.mxu0 0.0
    %1083 = vmatpush1.msra.mxu0 0.0
    %1084 = vmatprep.subr.mxu0 0.0
    %1085 = vmatpush1.msra.mxu0 0.0
    %1086 = vmatprep.subr.mxu0 0.0
    %1087 = vmatpush1.msra.mxu0 0.0
    %1088 = vmatprep.subr.mxu0 0.0
    %1089 = vmatpush1.msra.mxu0 0.0
    %1090 = vmatprep.subr.mxu0 0.0
    %1091 = vmatpush1.msra.mxu0 0.0
    %1092 = vmatprep.subr.mxu0 0.0
    %1093 = vmatpush1.msra.mxu0 0.0
    %1094 = vmatprep.subr.mxu0 0.0
    %1095 = vmatpush1.msra.mxu0 0.0
    %1096 = vmatprep.subr.mxu0 0.0
    %1097 = vmatpush1.msra.mxu0 0.0
    %1098 = vmatprep.subr.mxu0 0.0
    %1099 = vmatpush1.msra.mxu0 0.0
    %1100 = vmatprep.subr.mxu0 0.0
    %1101 = vmatpush1.msra.mxu0 0.0
    %1102 = vmatprep.subr.mxu0 0.0
    %1103 = vmatpush1.msra.mxu0 0.0
    %1104 = vmatprep.subr.mxu0 0.0
    %1105 = vmatpush1.msra.mxu0 0.0
    %1106 = vmatprep.subr.mxu0 0.0
    %1107 = vmatpush1.msra.mxu0 0.0
    %1108 = vmatprep.subr.mxu0 0.0
    %1109 = vmatpush1.msra.mxu0 0.0
    %1110 = vmatprep.subr.mxu0 0.0
    %1111 = vmatpush1.msra.mxu0 0.0
    %1112 = vmatprep.subr.mxu0 0.0
    %1113 = vmatpush1.msra.mxu0 0.0
    %1114 = vmatprep.subr.mxu0 0.0
    %1115 = vmatpush1.msra.mxu0 0.0
    %1116 = vmatprep.subr.mxu0 0.0
    %1117 = vmatpush1.msra.mxu0 0.0
    %1118 = vmatprep.subr.mxu0 0.0
    %1119 = vmatpush1.msra.mxu0 0.0
    %1120 = vmatprep.subr.mxu0 0.0
    %1121 = vmatpush1.msra.mxu0 0.0
    %1122 = vmatprep.subr.mxu0 0.0
    %1123 = vmatpush1.msra.mxu0 0.0
    %1124 = vmatprep.subr.mxu0 0.0
    %1125 = vmatpush1.msra.mxu0 0.0
    %1126 = vmatprep.subr.mxu0 0.0
    %1127 = vmatpush1.msra.mxu0 0.0
    %1128 = vmatprep.subr.mxu0 0.0
    %1129 = vmatpush1.msra.mxu0 0.0
    %1130 = vmatprep.subr.mxu0 0.0
    %1131 = vmatpush1.msra.mxu0 0.0
    %1132 = vmatprep.subr.mxu0 0.0
    %1133 = vmatpush1.msra.mxu0 0.0
    %1134 = vmatprep.subr.mxu0 0.0
    %1135 = vmatpush1.msra.mxu0 0.0
    %1136 = vmatprep.subr.mxu0 0.0
    %1137 = vmatpush1.msra.mxu0 0.0
    %1138 = vmatprep.mubr.f32.mxu0 0.0
    %1139 = vmatmul.mubr.f32.gmra.mrb[0].mxu0 %v977
    %v1140 = vpop.f32.mrb[0].mxu0
    %v1141 = vadd.f32 0.0, %v1140
    %v1142 = vpop.f32.mrb[0].mxu0
    %1143 = vdwg.mxu0
    %v1144 = vadd.f32 %v1073, %v1141
    %v1145 = vxor.u32 %v1144, 2147483648
    %v1146 = vmul.f32 %v1145, 1.442695
    %v1147 = vpow.pop %v1146
    %v1148 = vadd.f32 %v1147, 1.0
    %v1149 = vrcp.pop %v1148
    %v1150 = vmul.f32 1.0, %v1149
    %v1151 = vtanh.pop %v1144
    %v1152 = vmul.f32 %v1150, %v958
    %1154 = vrot.lane.b32.xlu0 %v1151, 64
    %v1155 = vpop.permute.xlu0 %1154
    %v1157 = vmul.f32 %v1150, %v1155
    %1159 = vrot.lane.b32.xlu0 %v1157, 32
    %v1160 = vpop.permute.xlu0 %1159
    %v1162 = vadd.f32 %v1152, %v1160
    %v1163 = vtanh.pop %v1162
    %1165 = vrot.lane.b32.xlu0 %v1163, 64
    %v1166 = vpop.permute.xlu0 %1165
    %v1168 = vmul.f32 %v1150, %v1166
    %1170 = vrot.lane.b32.xlu0 %v1168, 32
    %v1171 = vpop.permute.xlu0 %1170
    %s1173 = scalar_lea.vmem [#allocation4], 10
    %1174 = vst.msk [vmem:[%s1173] sm:$0x3] %vm148, %v1171
    %1176 = vrot.lane.b32.xlu0 %v1162, 96
    %v1177 = vpop.permute.xlu0 %1176
    %s1179 = scalar_lea.vmem [#allocation6], 10
    %1180 = vst.msk [vmem:[%s1179] sm:$0x3] %vm148, %v1177
    %v1181 = vsel %vm41, %v1171, 0
    %1183 = vmatprep.subr.mxu0 0.0
    %1184 = vmatpush1.msra.mxu0 %v33
    %1185 = vmatprep.subr.mxu0 0.0
    %1186 = vmatpush1.msra.mxu0 %v34
    %1187 = vmatprep.subr.mxu0 0.0
    %1188 = vmatpush1.msra.mxu0 %v35
    %1189 = vmatprep.subr.mxu0 0.0
    %1190 = vmatpush1.msra.mxu0 %v36
    %1191 = vmatprep.subr.mxu0 0.0
    %1192 = vmatpush1.msra.mxu0 0.0
    %1193 = vmatprep.subr.mxu0 0.0
    %1194 = vmatpush1.msra.mxu0 0.0
    %1195 = vmatprep.subr.mxu0 0.0
    %1196 = vmatpush1.msra.mxu0 0.0
    %1197 = vmatprep.subr.mxu0 0.0
    %1198 = vmatpush1.msra.mxu0 0.0
    %1199 = vmatprep.subr.mxu0 0.0
    %1200 = vmatpush1.msra.mxu0 0.0
    %1201 = vmatprep.subr.mxu0 0.0
    %1202 = vmatpush1.msra.mxu0 0.0
    %1203 = vmatprep.subr.mxu0 0.0
    %1204 = vmatpush1.msra.mxu0 0.0
    %1205 = vmatprep.subr.mxu0 0.0
    %1206 = vmatpush1.msra.mxu0 0.0
    %1207 = vmatprep.subr.mxu0 0.0
    %1208 = vmatpush1.msra.mxu0 0.0
    %1209 = vmatprep.subr.mxu0 0.0
    %1210 = vmatpush1.msra.mxu0 0.0
    %1211 = vmatprep.subr.mxu0 0.0
    %1212 = vmatpush1.msra.mxu0 0.0
    %1213 = vmatprep.subr.mxu0 0.0
    %1214 = vmatpush1.msra.mxu0 0.0
    %1215 = vmatprep.subr.mxu0 0.0
    %1216 = vmatpush1.msra.mxu0 0.0
    %1217 = vmatprep.subr.mxu0 0.0
    %1218 = vmatpush1.msra.mxu0 0.0
    %1219 = vmatprep.subr.mxu0 0.0
    %1220 = vmatpush1.msra.mxu0 0.0
    %1221 = vmatprep.subr.mxu0 0.0
    %1222 = vmatpush1.msra.mxu0 0.0
    %1223 = vmatprep.subr.mxu0 0.0
    %1224 = vmatpush1.msra.mxu0 0.0
    %1225 = vmatprep.subr.mxu0 0.0
    %1226 = vmatpush1.msra.mxu0 0.0
    %1227 = vmatprep.subr.mxu0 0.0
    %1228 = vmatpush1.msra.mxu0 0.0
    %1229 = vmatprep.subr.mxu0 0.0
    %1230 = vmatpush1.msra.mxu0 0.0
    %1231 = vmatprep.subr.mxu0 0.0
    %1232 = vmatpush1.msra.mxu0 0.0
    %1233 = vmatprep.subr.mxu0 0.0
    %1234 = vmatpush1.msra.mxu0 0.0
    %1235 = vmatprep.subr.mxu0 0.0
    %1236 = vmatpush1.msra.mxu0 0.0
    %1237 = vmatprep.subr.mxu0 0.0
    %1238 = vmatpush1.msra.mxu0 0.0
    %1239 = vmatprep.subr.mxu0 0.0
    %1240 = vmatpush1.msra.mxu0 0.0
    %1241 = vmatprep.subr.mxu0 0.0
    %1242 = vmatpush1.msra.mxu0 0.0
    %1243 = vmatprep.subr.mxu0 0.0
    %1244 = vmatpush1.msra.mxu0 0.0
    %1245 = vmatprep.subr.mxu0 0.0
    %1246 = vmatpush1.msra.mxu0 0.0
    %1247 = vmatprep.mubr.f32.mxu0 0.0
    %1248 = vmatmul.mubr.f32.gmra.mrb[0].mxu0 %v1181
    %v1249 = vpop.f32.mrb[0].mxu0
    %v1250 = vadd.f32 %v159, %v1249
    %v1251 = vpop.f32.mrb[0].mxu0
    %1252 = vdwg.mxu0
    %v1253 = vsel %vm233, %v1250, -inf
    %v1254 = vrot.slane %v1253, 4
    %v1255 = vmax.f32 %v1253, %v1254
    %v1256 = vrot.slane %v1255, 2
    %v1257 = vmax.f32 %v1255, %v1256
    %v1258 = vrot.slane %v1257, 1
    %v1259 = vmax.f32 %v1257, %v1258
    %v1260 = vsub.f32 %v1250, %v1259
    %v1261 = vmul.f32 %v1260, 1.442695
    %v1262 = vpow.pop %v1261
    %v1263 = vsel %vm233, %v1262, 0.0
    %v1264 = vrot.slane %v1263, 4
    %v1265 = vadd.f32 %v1263, %v1264
    %v1266 = vrot.slane %v1265, 2
    %v1267 = vadd.f32 %v1265, %v1266
    %v1268 = vrot.slane %v1267, 1
    %v1269 = vadd.f32 %v1267, %v1268
    %v1270 = vlog2.pop %v1269
    %v1271 = vmul.f32 %v1270, 0.6931472
    %v1272 = vadd.f32 %v1259, %v1271
    %v1273 = vsub.f32 %v1250, %v1272
    %s1274 = scalar_lea.vmem [#allocation8], 10
    %1275 = vst.msk [vmem:[%s1274] sm:$0x3] %vm233, %v1273
    %s1276 = scalar_lea.vmem %s0, 12
    %v1277 = vld [vmem:[%s1276] sm:$0x3]
    %1278 = vmatprep.subr.mxu0 0.0
    %1279 = vmatpush1.msra.mxu0 %v29
    %1280 = vmatprep.subr.mxu0 0.0
    %1281 = vmatpush1.msra.mxu0 %v30
    %1282 = vmatprep.subr.mxu0 0.0
    %1283 = vmatpush1.msra.mxu0 %v31
    %1284 = vmatprep.subr.mxu0 0.0
    %1285 = vmatpush1.msra.mxu0 %v32
    %1286 = vmatprep.subr.mxu0 0.0
    %1287 = vmatpush1.msra.mxu0 0.0
    %1288 = vmatprep.subr.mxu0 0.0
    %1289 = vmatpush1.msra.mxu0 0.0
    %1290 = vmatprep.subr.mxu0 0.0
    %1291 = vmatpush1.msra.mxu0 0.0
    %1292 = vmatprep.subr.mxu0 0.0
    %1293 = vmatpush1.msra.mxu0 0.0
    %1294 = vmatprep.subr.mxu0 0.0
    %1295 = vmatpush1.msra.mxu0 0.0
    %1296 = vmatprep.subr.mxu0 0.0
    %1297 = vmatpush1.msra.mxu0 0.0
    %1298 = vmatprep.subr.mxu0 0.0
    %1299 = vmatpush1.msra.mxu0 0.0
    %1300 = vmatprep.subr.mxu0 0.0
    %1301 = vmatpush1.msra.mxu0 0.0
    %1302 = vmatprep.subr.mxu0 0.0
    %1303 = vmatpush1.msra.mxu0 0.0
    %1304 = vmatprep.subr.mxu0 0.0
    %1305 = vmatpush1.msra.mxu0 0.0
    %1306 = vmatprep.subr.mxu0 0.0
    %1307 = vmatpush1.msra.mxu0 0.0
    %1308 = vmatprep.subr.mxu0 0.0
    %1309 = vmatpush1.msra.mxu0 0.0
    %1310 = vmatprep.subr.mxu0 0.0
    %1311 = vmatpush1.msra.mxu0 0.0
    %1312 = vmatprep.subr.mxu0 0.0
    %1313 = vmatpush1.msra.mxu0 0.0
    %1314 = vmatprep.subr.mxu0 0.0
    %1315 = vmatpush1.msra.mxu0 0.0
    %1316 = vmatprep.subr.mxu0 0.0
    %1317 = vmatpush1.msra.mxu0 0.0
    %1318 = vmatprep.subr.mxu0 0.0
    %1319 = vmatpush1.msra.mxu0 0.0
    %1320 = vmatprep.subr.mxu0 0.0
    %1321 = vmatpush1.msra.mxu0 0.0
    %1322 = vmatprep.subr.mxu0 0.0
    %1323 = vmatpush1.msra.mxu0 0.0
    %1324 = vmatprep.subr.mxu0 0.0
    %1325 = vmatpush1.msra.mxu0 0.0
    %1326 = vmatprep.subr.mxu0 0.0
    %1327 = vmatpush1.msra.mxu0 0.0
    %1328 = vmatprep.subr.mxu0 0.0
    %1329 = vmatpush1.msra.mxu0 0.0
    %1330 = vmatprep.subr.mxu0 0.0
    %1331 = vmatpush1.msra.mxu0 0.0
    %1332 = vmatprep.subr.mxu0 0.0
    %1333 = vmatpush1.msra.mxu0 0.0
    %1334 = vmatprep.subr.mxu0 0.0
    %1335 = vmatpush1.msra.mxu0 0.0
    %1336 = vmatprep.subr.mxu0 0.0
    %1337 = vmatpush1.msra.mxu0 0.0
    %1338 = vmatprep.subr.mxu0 0.0
    %1339 = vmatpush1.msra.mxu0 0.0
    %1340 = vmatprep.subr.mxu0 0.0
    %1341 = vmatpush1.msra.mxu0 0.0
    %1342 = vmatprep.mubr.f32.mxu0 0.0
    %1343 = vmatmul.mubr.f32.gmra.mrb[0].mxu0 %v1181
    %v1344 = vpop.f32.mrb[0].mxu0
    %v1345 = vadd.f32 0.0, %v1344
    %v1346 = vpop.f32.mrb[0].mxu0
    %1347 = vdwg.mxu0
    %v1348 = vadd.f32 %v1277, %v1345
    %v1349 = vxor.u32 %v1348, 2147483648
    %v1350 = vmul.f32 %v1349, 1.442695
    %v1351 = vpow.pop %v1350
    %v1352 = vadd.f32 %v1351, 1.0
    %v1353 = vrcp.pop %v1352
    %v1354 = vmul.f32 1.0, %v1353
    %v1355 = vtanh.pop %v1348
    %v1356 = vmul.f32 %v1354, %v1162
    %1358 = vrot.lane.b32.xlu0 %v1355, 64
    %v1359 = vpop.permute.xlu0 %1358
    %v1361 = vmul.f32 %v1354, %v1359
    %1363 = vrot.lane.b32.xlu0 %v1361, 32
    %v1364 = vpop.permute.xlu0 %1363
    %v1366 = vadd.f32 %v1356, %v1364
    %v1367 = vtanh.pop %v1366
    %1369 = vrot.lane.b32.xlu0 %v1367, 64
    %v1370 = vpop.permute.xlu0 %1369
    %v1372 = vmul.f32 %v1354, %v1370
    %1374 = vrot.lane.b32.xlu0 %v1372, 32
    %v1375 = vpop.permute.xlu0 %1374
    %s1377 = scalar_lea.vmem [#allocation4], 12
    %1378 = vst.msk [vmem:[%s1377] sm:$0x3] %vm148, %v1375
    %1380 = vrot.lane.b32.xlu0 %v1366, 96
    %v1381 = vpop.permute.xlu0 %1380
    %s1383 = scalar_lea.vmem [#allocation6], 12
    %1384 = vst.msk [vmem:[%s1383] sm:$0x3] %vm148, %v1381
    %v1385 = vsel %vm41, %v1375, 0
    %1387 = vmatprep.subr.mxu0 0.0
    %1388 = vmatpush1.msra.mxu0 %v33
    %1389 = vmatprep.subr.mxu0 0.0
    %1390 = vmatpush1.msra.mxu0 %v34
    %1391 = vmatprep.subr.mxu0 0.0
    %1392 = vmatpush1.msra.mxu0 %v35
    %1393 = vmatprep.subr.mxu0 0.0
    %1394 = vmatpush1.msra.mxu0 %v36
    %1395 = vmatprep.subr.mxu0 0.0
    %1396 = vmatpush1.msra.mxu0 0.0
    %1397 = vmatprep.subr.mxu0 0.0
    %1398 = vmatpush1.msra.mxu0 0.0
    %1399 = vmatprep.subr.mxu0 0.0
    %1400 = vmatpush1.msra.mxu0 0.0
    %1401 = vmatprep.subr.mxu0 0.0
    %1402 = vmatpush1.msra.mxu0 0.0
    %1403 = vmatprep.subr.mxu0 0.0
    %1404 = vmatpush1.msra.mxu0 0.0
    %1405 = vmatprep.subr.mxu0 0.0
    %1406 = vmatpush1.msra.mxu0 0.0
    %1407 = vmatprep.subr.mxu0 0.0
    %1408 = vmatpush1.msra.mxu0 0.0
    %1409 = vmatprep.subr.mxu0 0.0
    %1410 = vmatpush1.msra.mxu0 0.0
    %1411 = vmatprep.subr.mxu0 0.0
    %1412 = vmatpush1.msra.mxu0 0.0
    %1413 = vmatprep.subr.mxu0 0.0
    %1414 = vmatpush1.msra.mxu0 0.0
    %1415 = vmatprep.subr.mxu0 0.0
    %1416 = vmatpush1.msra.mxu0 0.0
    %1417 = vmatprep.subr.mxu0 0.0
    %1418 = vmatpush1.msra.mxu0 0.0
    %1419 = vmatprep.subr.mxu0 0.0
    %1420 = vmatpush1.msra.mxu0 0.0
    %1421 = vmatprep.subr.mxu0 0.0
    %1422 = vmatpush1.msra.mxu0 0.0
    %1423 = vmatprep.subr.mxu0 0.0
    %1424 = vmatpush1.msra.mxu0 0.0
    %1425 = vmatprep.subr.mxu0 0.0
    %1426 = vmatpush1.msra.mxu0 0.0
    %1427 = vmatprep.subr.mxu0 0.0
    %1428 = vmatpush1.msra.mxu0 0.0
    %1429 = vmatprep.subr.mxu0 0.0
    %1430 = vmatpush1.msra.mxu0 0.0
    %1431 = vmatprep.subr.mxu0 0.0
    %1432 = vmatpush1.msra.mxu0 0.0
    %1433 = vmatprep.subr.mxu0 0.0
    %1434 = vmatpush1.msra.mxu0 0.0
    %1435 = vmatprep.subr.mxu0 0.0
    %1436 = vmatpush1.msra.mxu0 0.0
    %1437 = vmatprep.subr.mxu0 0.0
    %1438 = vmatpush1.msra.mxu0 0.0
    %1439 = vmatprep.subr.mxu0 0.0
    %1440 = vmatpush1.msra.mxu0 0.0
    %1441 = vmatprep.subr.mxu0 0.0
    %1442 = vmatpush1.msra.mxu0 0.0
    %1443 = vmatprep.subr.mxu0 0.0
    %1444 = vmatpush1.msra.mxu0 0.0
    %1445 = vmatprep.subr.mxu0 0.0
    %1446 = vmatpush1.msra.mxu0 0.0
    %1447 = vmatprep.subr.mxu0 0.0
    %1448 = vmatpush1.msra.mxu0 0.0
    %1449 = vmatprep.subr.mxu0 0.0
    %1450 = vmatpush1.msra.mxu0 0.0
    %1451 = vmatprep.mubr.f32.mxu0 0.0
    %1452 = vmatmul.mubr.f32.gmra.mrb[0].mxu0 %v1385
    %v1453 = vpop.f32.mrb[0].mxu0
    %v1454 = vadd.f32 %v159, %v1453
    %v1455 = vpop.f32.mrb[0].mxu0
    %1456 = vdwg.mxu0
    %v1457 = vsel %vm233, %v1454, -inf
    %v1458 = vrot.slane %v1457, 4
    %v1459 = vmax.f32 %v1457, %v1458
    %v1460 = vrot.slane %v1459, 2
    %v1461 = vmax.f32 %v1459, %v1460
    %v1462 = vrot.slane %v1461, 1
    %v1463 = vmax.f32 %v1461, %v1462
    %v1464 = vsub.f32 %v1454, %v1463
    %v1465 = vmul.f32 %v1464, 1.442695
    %v1466 = vpow.pop %v1465
    %v1467 = vsel %vm233, %v1466, 0.0
    %v1468 = vrot.slane %v1467, 4
    %v1469 = vadd.f32 %v1467, %v1468
    %v1470 = vrot.slane %v1469, 2
    %v1471 = vadd.f32 %v1469, %v1470
    %v1472 = vrot.slane %v1471, 1
    %v1473 = vadd.f32 %v1471, %v1472
    %v1474 = vlog2.pop %v1473
    %v1475 = vmul.f32 %v1474, 0.6931472
    %v1476 = vadd.f32 %v1463, %v1475
    %v1477 = vsub.f32 %v1454, %v1476
    %s1478 = scalar_lea.vmem [#allocation8], 12
    %1479 = vst.msk [vmem:[%s1478] sm:$0x3] %vm233, %v1477
    %s1480 = scalar_lea.vmem %s0, 14
    %v1481 = vld [vmem:[%s1480] sm:$0x3]
    %1482 = vmatprep.subr.mxu0 0.0
    %1483 = vmatpush1.msra.mxu0 %v29
    %1484 = vmatprep.subr.mxu0 0.0
    %1485 = vmatpush1.msra.mxu0 %v30
    %1486 = vmatprep.subr.mxu0 0.0
    %1487 = vmatpush1.msra.mxu0 %v31
    %1488 = vmatprep.subr.mxu0 0.0
    %1489 = vmatpush1.msra.mxu0 %v32
    %1490 = vmatprep.subr.mxu0 0.0
    %1491 = vmatpush1.msra.mxu0 0.0
    %1492 = vmatprep.subr.mxu0 0.0
    %1493 = vmatpush1.msra.mxu0 0.0
    %1494 = vmatprep.subr.mxu0 0.0
    %1495 = vmatpush1.msra.mxu0 0.0
    %1496 = vmatprep.subr.mxu0 0.0
    %1497 = vmatpush1.msra.mxu0 0.0
    %1498 = vmatprep.subr.mxu0 0.0
    %1499 = vmatpush1.msra.mxu0 0.0
    %1500 = vmatprep.subr.mxu0 0.0
    %1501 = vmatpush1.msra.mxu0 0.0
    %1502 = vmatprep.subr.mxu0 0.0
    %1503 = vmatpush1.msra.mxu0 0.0
    %1504 = vmatprep.subr.mxu0 0.0
    %1505 = vmatpush1.msra.mxu0 0.0
    %1506 = vmatprep.subr.mxu0 0.0
    %1507 = vmatpush1.msra.mxu0 0.0
    %1508 = vmatprep.subr.mxu0 0.0
    %1509 = vmatpush1.msra.mxu0 0.0
    %1510 = vmatprep.subr.mxu0 0.0
    %1511 = vmatpush1.msra.mxu0 0.0
    %1512 = vmatprep.subr.mxu0 0.0
    %1513 = vmatpush1.msra.mxu0 0.0
    %1514 = vmatprep.subr.mxu0 0.0
    %1515 = vmatpush1.msra.mxu0 0.0
    %1516 = vmatprep.subr.mxu0 0.0
    %1517 = vmatpush1.msra.mxu0 0.0
    %1518 = vmatprep.subr.mxu0 0.0
    %1519 = vmatpush1.msra.mxu0 0.0
    %1520 = vmatprep.subr.mxu0 0.0
    %1521 = vmatpush1.msra.mxu0 0.0
    %1522 = vmatprep.subr.mxu0 0.0
    %1523 = vmatpush1.msra.mxu0 0.0
    %1524 = vmatprep.subr.mxu0 0.0
    %1525 = vmatpush1.msra.mxu0 0.0
    %1526 = vmatprep.subr.mxu0 0.0
    %1527 = vmatpush1.msra.mxu0 0.0
    %1528 = vmatprep.subr.mxu0 0.0
    %1529 = vmatpush1.msra.mxu0 0.0
    %1530 = vmatprep.subr.mxu0 0.0
    %1531 = vmatpush1.msra.mxu0 0.0
    %1532 = vmatprep.subr.mxu0 0.0
    %1533 = vmatpush1.msra.mxu0 0.0
    %1534 = vmatprep.subr.mxu0 0.0
    %1535 = vmatpush1.msra.mxu0 0.0
    %1536 = vmatprep.subr.mxu0 0.0
    %1537 = vmatpush1.msra.mxu0 0.0
    %1538 = vmatprep.subr.mxu0 0.0
    %1539 = vmatpush1.msra.mxu0 0.0
    %1540 = vmatprep.subr.mxu0 0.0
    %1541 = vmatpush1.msra.mxu0 0.0
    %1542 = vmatprep.subr.mxu0 0.0
    %1543 = vmatpush1.msra.mxu0 0.0
    %1544 = vmatprep.subr.mxu0 0.0
    %1545 = vmatpush1.msra.mxu0 0.0
    %1546 = vmatprep.mubr.f32.mxu0 0.0
    %1547 = vmatmul.mubr.f32.gmra.mrb[0].mxu0 %v1385
    %v1548 = vpop.f32.mrb[0].mxu0
    %v1549 = vadd.f32 0.0, %v1548
    %v1550 = vpop.f32.mrb[0].mxu0
    %1551 = vdwg.mxu0
    %v1552 = vadd.f32 %v1481, %v1549
    %v1553 = vxor.u32 %v1552, 2147483648
    %v1554 = vmul.f32 %v1553, 1.442695
    %v1555 = vpow.pop %v1554
    %v1556 = vadd.f32 %v1555, 1.0
    %v1557 = vrcp.pop %v1556
    %v1558 = vmul.f32 1.0, %v1557
    %v1559 = vtanh.pop %v1552
    %v1560 = vmul.f32 %v1558, %v1366
    %1562 = vrot.lane.b32.xlu0 %v1559, 64
    %v1563 = vpop.permute.xlu0 %1562
    %v1565 = vmul.f32 %v1558, %v1563
    %1567 = vrot.lane.b32.xlu0 %v1565, 32
    %v1568 = vpop.permute.xlu0 %1567
    %v1570 = vadd.f32 %v1560, %v1568
    %v1571 = vtanh.pop %v1570
    %1573 = vrot.lane.b32.xlu0 %v1571, 64
    %v1574 = vpop.permute.xlu0 %1573
    %v1576 = vmul.f32 %v1558, %v1574
    %1578 = vrot.lane.b32.xlu0 %v1576, 32
    %v1579 = vpop.permute.xlu0 %1578
    %s1581 = scalar_lea.vmem [#allocation4], 14
    %1582 = vst.msk [vmem:[%s1581] sm:$0x3] %vm148, %v1579
    %1584 = vrot.lane.b32.xlu0 %v1570, 96
    %v1585 = vpop.permute.xlu0 %1584
    %s1587 = scalar_lea.vmem [#allocation6], 14
    %1588 = vst.msk [vmem:[%s1587] sm:$0x3] %vm148, %v1585
    %v1589 = vsel %vm41, %v1579, 0
    %1591 = vmatprep.subr.mxu0 0.0
    %1592 = vmatpush1.msra.mxu0 %v33
    %1593 = vmatprep.subr.mxu0 0.0
    %1594 = vmatpush1.msra.mxu0 %v34
    %1595 = vmatprep.subr.mxu0 0.0
    %1596 = vmatpush1.msra.mxu0 %v35
    %1597 = vmatprep.subr.mxu0 0.0
    %1598 = vmatpush1.msra.mxu0 %v36
    %1599 = vmatprep.subr.mxu0 0.0
    %1600 = vmatpush1.msra.mxu0 0.0
    %1601 = vmatprep.subr.mxu0 0.0
    %1602 = vmatpush1.msra.mxu0 0.0
    %1603 = vmatprep.subr.mxu0 0.0
    %1604 = vmatpush1.msra.mxu0 0.0
    %1605 = vmatprep.subr.mxu0 0.0
    %1606 = vmatpush1.msra.mxu0 0.0
    %1607 = vmatprep.subr.mxu0 0.0
    %1608 = vmatpush1.msra.mxu0 0.0
    %1609 = vmatprep.subr.mxu0 0.0
    %1610 = vmatpush1.msra.mxu0 0.0
    %1611 = vmatprep.subr.mxu0 0.0
    %1612 = vmatpush1.msra.mxu0 0.0
    %1613 = vmatprep.subr.mxu0 0.0
    %1614 = vmatpush1.msra.mxu0 0.0
    %1615 = vmatprep.subr.mxu0 0.0
    %1616 = vmatpush1.msra.mxu0 0.0
    %1617 = vmatprep.subr.mxu0 0.0
    %1618 = vmatpush1.msra.mxu0 0.0
    %1619 = vmatprep.subr.mxu0 0.0
    %1620 = vmatpush1.msra.mxu0 0.0
    %1621 = vmatprep.subr.mxu0 0.0
    %1622 = vmatpush1.msra.mxu0 0.0
    %1623 = vmatprep.subr.mxu0 0.0
    %1624 = vmatpush1.msra.mxu0 0.0
    %1625 = vmatprep.subr.mxu0 0.0
    %1626 = vmatpush1.msra.mxu0 0.0
    %1627 = vmatprep.subr.mxu0 0.0
    %1628 = vmatpush1.msra.mxu0 0.0
    %1629 = vmatprep.subr.mxu0 0.0
    %1630 = vmatpush1.msra.mxu0 0.0
    %1631 = vmatprep.subr.mxu0 0.0
    %1632 = vmatpush1.msra.mxu0 0.0
    %1633 = vmatprep.subr.mxu0 0.0
    %1634 = vmatpush1.msra.mxu0 0.0
    %1635 = vmatprep.subr.mxu0 0.0
    %1636 = vmatpush1.msra.mxu0 0.0
    %1637 = vmatprep.subr.mxu0 0.0
    %1638 = vmatpush1.msra.mxu0 0.0
    %1639 = vmatprep.subr.mxu0 0.0
    %1640 = vmatpush1.msra.mxu0 0.0
    %1641 = vmatprep.subr.mxu0 0.0
    %1642 = vmatpush1.msra.mxu0 0.0
    %1643 = vmatprep.subr.mxu0 0.0
    %1644 = vmatpush1.msra.mxu0 0.0
    %1645 = vmatprep.subr.mxu0 0.0
    %1646 = vmatpush1.msra.mxu0 0.0
    %1647 = vmatprep.subr.mxu0 0.0
    %1648 = vmatpush1.msra.mxu0 0.0
    %1649 = vmatprep.subr.mxu0 0.0
    %1650 = vmatpush1.msra.mxu0 0.0
    %1651 = vmatprep.subr.mxu0 0.0
    %1652 = vmatpush1.msra.mxu0 0.0
    %1653 = vmatprep.subr.mxu0 0.0
    %1654 = vmatpush1.msra.mxu0 0.0
    %1655 = vmatprep.mubr.f32.mxu0 0.0
    %1656 = vmatmul.mubr.f32.gmra.mrb[0].mxu0 %v1589
    %v1657 = vpop.f32.mrb[0].mxu0
    %v1658 = vadd.f32 %v159, %v1657
    %v1659 = vpop.f32.mrb[0].mxu0
    %1660 = vdwg.mxu0
    %v1661 = vsel %vm233, %v1658, -inf
    %v1662 = vrot.slane %v1661, 4
    %v1663 = vmax.f32 %v1661, %v1662
    %v1664 = vrot.slane %v1663, 2
    %v1665 = vmax.f32 %v1663, %v1664
    %v1666 = vrot.slane %v1665, 1
    %v1667 = vmax.f32 %v1665, %v1666
    %v1668 = vsub.f32 %v1658, %v1667
    %v1669 = vmul.f32 %v1668, 1.442695
    %v1670 = vpow.pop %v1669
    %v1671 = vsel %vm233, %v1670, 0.0
    %v1672 = vrot.slane %v1671, 4
    %v1673 = vadd.f32 %v1671, %v1672
    %v1674 = vrot.slane %v1673, 2
    %v1675 = vadd.f32 %v1673, %v1674
    %v1676 = vrot.slane %v1675, 1
    %v1677 = vadd.f32 %v1675, %v1676
    %v1678 = vlog2.pop %v1677
    %v1679 = vmul.f32 %v1678, 0.6931472
    %v1680 = vadd.f32 %v1667, %v1679
    %v1681 = vsub.f32 %v1658, %v1680
    %s1682 = scalar_lea.vmem [#allocation8], 14
    %1683 = vst.msk [vmem:[%s1682] sm:$0x3] %vm233, %v1681
    %1684 = vst.msk [vmem:[#allocation2] sm:$0x3] %vm148, %v1579
    %1685 = vst.msk [vmem:[#allocation3] sm:$0x3] %vm148, %v1585
    // Predicated region
    $region22: #{custom_lstm_forward.1} parent=1 // pred_check
      _
    $region23: #{custom_lstm_forward.1} parent=1 // pred_check_branch
      %1687 = sbr.rel (0) target = $region25
    $region24: #{custom_lstm_forward.1} parent=1 // pred_region
      %s1689 = ssub.s32 256, 256
      %1690 = vsyncadd [#allocation5], %s1689
      %s1691 = sshll.u32 [#allocation4], 4
      %s1692 = int_to_ptr.vmem [resolvable:$true] %s1691
      %1697 = dma.vmem_to_hbm [thread:$0]  %s1692, 256, %s4, [#allocation5], 32, 32, 2
    $region25: #{custom_lstm_forward.1} parent=1 // pred_fallthru
      _
    // Predicated region
    $region26: #{custom_lstm_forward.1} parent=1 // pred_check
      _
    $region27: #{custom_lstm_forward.1} parent=1 // pred_check_branch
      %1699 = sbr.rel (0) target = $region29
    $region28: #{custom_lstm_forward.1} parent=1 // pred_region
      %s1701 = ssub.s32 256, 256
      %1702 = vsyncadd [#allocation7], %s1701
      %s1703 = sshll.u32 [#allocation6], 4
      %s1704 = int_to_ptr.vmem [resolvable:$true] %s1703
      %1709 = dma.vmem_to_hbm [thread:$0]  %s1704, 256, %s5, [#allocation7], 32, 32, 2
    $region29: #{custom_lstm_forward.1} parent=1 // pred_fallthru
      _
    // Predicated region
    $region30: #{custom_lstm_forward.1} parent=1 // pred_check
      _
    $region31: #{custom_lstm_forward.1} parent=1 // pred_check_branch
      %1711 = sbr.rel (0) target = $region33
    $region32: #{custom_lstm_forward.1} parent=1 // pred_region
      %s1713 = ssub.s32 256, 256
      %1714 = vsyncadd [#allocation7], %s1713
      %s1715 = sshll.u32 [#allocation8], 4
      %s1716 = int_to_ptr.vmem [resolvable:$true] %s1715
      %1721 = dma.vmem_to_hbm [thread:$0]  %s1716, 256, %s6, [#allocation7], 32, 32, 2
    $region33: #{custom_lstm_forward.1} parent=1 // pred_fallthru
      _
    // Predicated region
    $region34: #{custom_lstm_forward.1} parent=1 // pred_check
      _
    $region35: #{custom_lstm_forward.1} parent=1 // pred_check_branch
      %1723 = sbr.rel (0) target = $region37
    $region36: #{custom_lstm_forward.1} parent=1 // pred_region
      %1724 = dma.done [#allocation5], 256
    $region37: #{custom_lstm_forward.1} parent=1 // pred_fallthru
      _
    // Predicated region
    $region38: #{custom_lstm_forward.1} parent=1 // pred_check
      _
    $region39: #{custom_lstm_forward.1} parent=1 // pred_check_branch
      %1726 = sbr.rel (0) target = $region41
    $region40: #{custom_lstm_forward.1} parent=1 // pred_region
      %1727 = dma.done [#allocation7], 256
    $region41: #{custom_lstm_forward.1} parent=1 // pred_fallthru
      _
    // Predicated region
    $region42: #{custom_lstm_forward.1} parent=1 // pred_check
      _
    $region43: #{custom_lstm_forward.1} parent=1 // pred_check_branch
      %1729 = sbr.rel (0) target = $region45
    $region44: #{custom_lstm_forward.1} parent=1 // pred_region
      %1730 = dma.done [#allocation7], 256
    $region45: #{custom_lstm_forward.1} parent=1 // pred_fallthru
      _
    %1731 = vsyncpa [#allocation5], 1
    %1732 = vsyncpa [#allocation7], 1

</llo_original>
